<compile_context>
chip_gen: v6e
topology: v6e:2x2x1
jax: 0.10.0
libtpu: 0.0.40
codegen_flags: <defaults>
</compile_context>

<pallas_src>
import jax
import jax.numpy as jnp
from jax import lax
from jax.experimental import pallas as pl
from jax.experimental.pallas import tpu as pltpu


def _round_up(n, m):
    return (n + m - 1) // m * m


def _probe_roll():
    """(usable, like_np_roll): detect pltpu.roll availability/direction once."""
    try:
        def k(x_ref, o_ref):
            o_ref[...] = pltpu.roll(x_ref[...], shift=1, axis=1)
        x = jnp.tile(jnp.arange(128, dtype=jnp.float32)[None, :], (8, 1))
        y = pl.pallas_call(
            k, out_shape=jax.ShapeDtypeStruct((8, 128), jnp.float32))(x)
        # np.roll semantics: result[1] == x[0] == 0.0
        return True, bool(y[0, 1] == 0.0)
    except Exception:
        return False, True


# ------------------------------ fused kernel --------------------------------

def _make_fused_kernel(*, B, S2, SP, LP, W2, k1, C0, C1, R, NP,
                       use_roll, roll_like_np):
    f32 = jnp.float32

    def lane_shift(bip, d):
        """shifted[:, l] == bip[:, (l + d) % LP]  (left rotation by d lanes)."""
        if d == 0:
            return bip
        if use_roll:
            s = (LP - d) % LP if roll_like_np else d
            return pltpu.roll(bip, shift=s, axis=1)
        return jnp.concatenate([bip[:, d:], bip[:, :d]], axis=1)

    def kernel(xcols_ref, hbi0_ref, ham0_ref,
               w1_ref, b1_ref, whxT_ref, whhT_ref, bhh_ref, whbT_ref, bhb_ref,
               w2_ref, b2_ref, wb_ref, wa_ref, scale_ref, shift_ref,
               gang_ref, hbi_ref, ham_ref):
        t = pl.program_id(0)

        # Hidden state lives in the revisited (VMEM-resident) output blocks.
        @pl.when(t == 0)
        def _():
            hbi_ref[...] = hbi0_ref[...]
            ham_ref[...] = ham0_ref[...]

        # Lane-validity mask: within each 128-lane per-sample window only the
        # first S2 lanes are real pixels.  Masking bip keeps the carried state
        # and readout independent of padding-lane garbage.
        lane = lax.broadcasted_iota(jnp.int32, (1, LP), 1)
        valid = lane < S2
        for b in range(1, B):
            valid = valid | ((lane >= b * SP) & (lane < b * SP + S2))

        # --- bipolar: conv1 as one MXU matmul (bf16 operands, f32 accumulate),
        #     hidden-state skip, ReLU (GaussianNoise == identity in eval).
        pre = jnp.dot(w1_ref[...], xcols_ref[0], preferred_element_type=f32)
        bip = jnp.maximum(pre + b1_ref[...] + hbi_ref[...], 0.0)        # (C0, LP)
        bip = jnp.where(valid, bip, 0.0)

        # --- recurrent 1x1 convs (K=C0 / K=R): exact f32 VPU broadcast-FMAs,
        #     kept off the MXU (degenerate K), no sublane concat.
        ham_prev = ham_ref[...]                                         # (R, LP)
        z = jnp.zeros((R, LP), f32)
        for c in range(C0):
            z = z + whxT_ref[c] * bip[c:c + 1, :]
        for q in range(R):
            z = z + whhT_ref[q] * ham_prev[q:q + 1, :]
        ham_new = jnp.tanh(z + bhh_ref[...])                            # (R, LP)
        hbi_new = jnp.zeros((C0, LP), f32)
        for r in range(R):
            hbi_new = hbi_new + whbT_ref[r] * ham_new[r:r + 1, :]
        hbi_new = hbi_new + bhb_ref[...]                                # (C0, LP)
        ham_ref[...] = ham_new
        hbi_ref[...] = hbi_new

        # --- amacrine conv: ONE K=k1*k1*C0 matmul over a stacked operand of
        #     lane-rotated copies of bip.  Valid outputs (ho<H3, wo<W3) only
        #     read lanes < S2 inside their own 128-lane sample window; invalid
        #     lanes hold garbage that is masked out by the zeroed |W| slabs.
        taps = []
        for ki in range(k1):
            for kj in range(k1):
                taps.append(lane_shift(bip, ki * W2 + kj))
        stacked = jnp.concatenate(taps, axis=0).astype(jnp.bfloat16)    # (k1*k1*C0, LP)
        am = jnp.dot(w2_ref[...], stacked, preferred_element_type=f32)  # (C1, LP)
        am = -jnp.maximum(am + b2_ref[...], 0.0)                        # ReLU + InvertSign

        # --- ganglion: AbsLinear (|W| precomputed, channel-major, zeros at
        #     invalid/padding lanes) as exact f32 VPU FMAs, per-sample
        #     128-aligned lane reductions, ScaleShift, Softplus(threshold=20).
        acc = jnp.zeros((NP, LP), f32)
        for c in range(C0):
            acc = acc + wb_ref[c] * bip[c:c + 1, :]
        for c in range(C1):
            acc = acc + wa_ref[c] * am[c:c + 1, :]
        parts = [jnp.sum(acc[:, b * SP:(b + 1) * SP], axis=1, keepdims=True)
                 for b in range(B)]
        parts.append(jnp.zeros((NP, 128 - B), f32))
        y = jnp.concatenate(parts, axis=1)                              # (NP, 128) lane-dense
        y = y * scale_ref[...] + shift_ref[...]
        gang_ref[0] = jnp.where(y > 20.0, y,
                                jnp.log1p(jnp.exp(jnp.minimum(y, 20.0))))

    return kernel


# --------------------------------- builder -----------------------------------

def make_skip_amac_rnn(P, *, B, Cin, H, W, T):
    """One-time parameter prep + kernel build; returns a jitted sequence fn
    (xs, h_bi, h_am) -> (ganglion[T,B,n_units], h_bi_final, h_am_final) where
    each of the T grid steps is exactly one SkipAmacRNN.forward."""
    k0, k1 = P["k0"], P["k1"]
    C0 = P["w1"].shape[0]
    C1 = P["w2"].shape[0]
    R = P["whx"].shape[0]
    n_units = P["wlin"].shape[0]
    H2, W2 = H - k0 + 1, W - k0 + 1
    H3, W3 = H2 - k1 + 1, W2 - k1 + 1
    S2 = H2 * W2
    SP = _round_up(S2, 128)          # per-sample lane-aligned window
    LP = B * SP
    K0F = Cin * k0 * k0
    KC = k1 * k1 * C0
    NP = _round_up(n_units, 8)
    f32, bf16 = jnp.float32, jnp.bfloat16

    # ---- one-time parameter prep (hoisted off the per-step path) ----
    w1 = P["w1"].reshape(C0, K0F).astype(bf16)
    b1 = P["b1"].reshape(C0, 1).astype(f32)
    whxT = jnp.transpose(P["whx"]).reshape(C0, R, 1).astype(f32)   # [c] -> whx[:, c]
    whhT = jnp.transpose(P["whh"]).reshape(R, R, 1).astype(f32)    # [q] -> whh[:, q]
    bhh = P["bhh"].reshape(R, 1).astype(f32)
    whbT = jnp.transpose(P["whb"]).reshape(R, C0, 1).astype(f32)   # [r] -> whb[:, r]
    bhb = P["bhb"].reshape(C0, 1).astype(f32)
    # conv2 weight with K ordered tap-major / channel-minor to match `stacked`.
    w2 = jnp.transpose(P["w2"], (0, 2, 3, 1)).reshape(C1, KC).astype(bf16)
    b2 = P["b2"].reshape(C1, 1).astype(f32)
    # AbsLinear |W|, scattered to the kernel lane layout, channel-major.
    wabs = jnp.abs(P["wlin"]).astype(f32)
    wb = wabs[:, :C0 * S2].reshape(n_units, C0, S2)
    wa = jnp.pad(wabs[:, C0 * S2:].reshape(n_units, C1, H3, W3),
                 ((0, 0), (0, 0), (0, H2 - H3), (0, W2 - W3))).reshape(n_units, C1, S2)

    def layout_w(w):                              # (n, C, S2) -> (C, NP, LP)
        w = jnp.pad(w, ((0, NP - n_units), (0, 0), (0, SP - S2)))  # (NP, C, SP)
        w = jnp.tile(w, (1, 1, B))                                 # (NP, C, LP)
        return jnp.transpose(w, (1, 0, 2))

    wbp, wap = layout_w(wb), layout_w(wa)
    scale = jnp.pad(P["scale"], (0, NP - n_units)).reshape(NP, 1).astype(f32)
    shift = jnp.pad(P["shift"], (0, NP - n_units)).reshape(NP, 1).astype(f32)

    use_roll, roll_like_np = _probe_roll()
    kernel = _make_fused_kernel(B=B, S2=S2, SP=SP, LP=LP, W2=W2, k1=k1,
                                C0=C0, C1=C1, R=R, NP=NP,
                                use_roll=use_roll, roll_like_np=roll_like_np)

    grid_spec = pltpu.PrefetchScalarGridSpec(
        num_scalar_prefetch=0, grid=(T,),
        in_specs=[
            pl.BlockSpec((1, K0F, LP), lambda t: (t, 0, 0)),   # xcols (per step)
            pl.BlockSpec((C0, LP), lambda t: (0, 0)),          # h_bi init
            pl.BlockSpec((R, LP), lambda t: (0, 0)),           # h_am init
            pl.BlockSpec((C0, K0F), lambda t: (0, 0)),         # w1 (bf16)
            pl.BlockSpec((C0, 1), lambda t: (0, 0)),           # b1
            pl.BlockSpec((C0, R, 1), lambda t: (0, 0, 0)),     # whx^T columns
            pl.BlockSpec((R, R, 1), lambda t: (0, 0, 0)),      # whh^T columns
            pl.BlockSpec((R, 1), lambda t: (0, 0)),            # bhh
            pl.BlockSpec((R, C0, 1), lambda t: (0, 0, 0)),     # whb^T columns
            pl.BlockSpec((C0, 1), lambda t: (0, 0)),           # bhb
            pl.BlockSpec((C1, KC), lambda t: (0, 0)),          # w2 (bf16, stacked-K)
            pl.BlockSpec((C1, 1), lambda t: (0, 0)),           # b2
            pl.BlockSpec((C0, NP, LP), lambda t: (0, 0, 0)),   # |W| bip slabs
            pl.BlockSpec((C1, NP, LP), lambda t: (0, 0, 0)),   # |W| am slabs
            pl.BlockSpec((NP, 1), lambda t: (0, 0)),           # scale
            pl.BlockSpec((NP, 1), lambda t: (0, 0)),           # shift
        ],
        out_specs=(
            pl.BlockSpec((1, NP, 128), lambda t: (t, 0, 0)),   # ganglion per step
            pl.BlockSpec((C0, LP), lambda t: (0, 0)),          # carried / final h_bi
            pl.BlockSpec((R, LP), lambda t: (0, 0)),           # carried / final h_am
        ),
    )

    call = pl.pallas_call(
        kernel,
        out_shape=(jax.ShapeDtypeStruct((T, NP, 128), f32),
                   jax.ShapeDtypeStruct((C0, LP), f32),
                   jax.ShapeDtypeStruct((R, LP), f32)),
        grid_spec=grid_spec,
        compiler_params=pltpu.CompilerParams(
            dimension_semantics=("arbitrary",)),   # state carried across t
    )

    # im2col gather indices (constants); feature order (c, ki, kj) matches
    # torch Conv2d weight.reshape(C0, -1).
    hh = jnp.arange(k0)[:, None, None, None] + jnp.arange(H2)[None, None, :, None]
    ww = jnp.arange(k0)[None, :, None, None] + jnp.arange(W2)[None, None, None, :]

    def fold(a, C):                              # (B, C, H2, W2) -> (C, LP)
        af = jnp.transpose(a.reshape(B, C, S2), (1, 0, 2))
        af = jnp.pad(af, ((0, 0), (0, 0), (0, SP - S2)))
        return af.reshape(C, LP).astype(f32)

    def unfold(a, C):                            # (C, LP) -> (B, C, H2, W2)
        a2 = a.reshape(C, B, SP)[:, :, :S2]
        return jnp.transpose(a2, (1, 0, 2)).reshape(B, C, H2, W2)

    @jax.jit
    def run(xs, h_bi, h_am):
        # im2col over the WHOLE sequence (one gather, not one per step).
        patches = xs[:, :, :, hh, ww]                        # (T,B,Cin,k0,k0,H2,W2)
        patches = patches.reshape(T, B, K0F, S2)
        xcols = jnp.transpose(patches, (0, 2, 1, 3))         # (T, K0F, B, S2)
        xcols = jnp.pad(xcols, ((0, 0), (0, 0), (0, 0), (0, SP - S2)))
        xcols = xcols.reshape(T, K0F, LP).astype(bf16)

        gang_p, hbi_p, ham_p = call(
            xcols, fold(h_bi, C0), fold(h_am, R),
            w1, b1, whxT, whhT, bhh, whbT, bhb, w2, b2,
            wbp, wap, scale, shift)

        gang = jnp.transpose(gang_p[:, :n_units, :B], (0, 2, 1))   # (T, B, n_units)
        return gang, unfold(hbi_p, C0), unfold(ham_p, R)

    return run


# --------------------------- pure-JAX reference ------------------------------

def reference_step(x, h, P):
    """Single module forward in HIGHEST precision (ground truth)."""
    h_bi, h_am = h
    B = x.shape[0]
    C0 = P["w1"].shape[0]
    R = P["whx"].shape[0]
    dn = ("NCHW", "OIHW", "NCHW")
    HI = lax.Precision.HIGHEST

    conv1 = lax.conv_general_dilated(x, P["w1"], (1, 1), "VALID",
                                     dimension_numbers=dn, precision=HI)
    bip = jnp.maximum(conv1 + P["b1"][None, :, None, None] + h_bi, 0.0)
    bip_f = bip.reshape(B, C0, -1)
    ham_f = h_am.reshape(B, R, -1)
    hpre = (jnp.einsum("rc,bcs->brs", P["whx"], bip_f, precision=HI)
            + jnp.einsum("rq,bqs->brs", P["whh"], ham_f, precision=HI)
            + P["bhh"][None, :, None])
    ham_new = jnp.tanh(hpre)
    hbi_new = (jnp.einsum("cr,brs->bcs", P["whb"], ham_new, precision=HI)
               + P["bhb"][None, :, None])
    conv2 = lax.conv_general_dilated(bip, P["w2"], (1, 1), "VALID",
                                     dimension_numbers=dn, precision=HI)
    am = -jnp.maximum(conv2 + P["b2"][None, :, None, None], 0.0)
    cat = jnp.concatenate([bip.reshape(B, -1), am.reshape(B, -1)], axis=-1)
    y = jnp.einsum("bl,nl->bn", cat, jnp.abs(P["wlin"]), precision=HI)
    y = y * P["scale"][None, :] + P["shift"][None, :]
    gang = jnp.where(y > 20.0, y, jnp.log1p(jnp.exp(jnp.minimum(y, 20.0))))
    return gang, (hbi_new.reshape(h_bi.shape), ham_new.reshape(h_am.shape))


def reference_sequence(xs, h, P):
    gs = []
    for t in range(xs.shape[0]):
        g, h = reference_step(xs[t], h, P)
        gs.append(g)
    return jnp.stack(gs), h


# ----------------------------------- main ------------------------------------

if __name__ == "__main__":
    # Small shapes consistent with the module: img_shape=(4,16,16), ksizes=(7,5),
    # chans=[8,8], rnn_chans=[2], n_units=5, batch=2, seq len T=8.
    B, Cin, H, W, T = 2, 4, 16, 16, 8
    k0, k1 = 7, 5
    C0, C1, R, n_units = 8, 8, 2, 5
    H2, W2 = H - k0 + 1, W - k0 + 1
    H3, W3 = H2 - k1 + 1, W2 - k1 + 1
    L = C0 * H2 * W2 + C1 * H3 * W3

    key = jax.random.PRNGKey(0)
    ks = jax.random.split(key, 16)

    P = {
        "k0": k0, "k1": k1,
        "w1": 0.1 * jax.random.normal(ks[0], (C0, Cin, k0, k0), jnp.float32),
        "b1": 0.1 * jax.random.normal(ks[1], (C0,), jnp.float32),
        "whx": 0.2 * jax.random.normal(ks[2], (R, C0), jnp.float32),
        "whh": 0.2 * jax.random.normal(ks[3], (R, R), jnp.float32),
        "bhh": 0.1 * jax.random.normal(ks[4], (R,), jnp.float32),
        "whb": 0.2 * jax.random.normal(ks[5], (C0, R), jnp.float32),
        "bhb": 0.1 * jax.random.normal(ks[6], (C0,), jnp.float32),
        "w2": 0.1 * jax.random.normal(ks[7], (C1, C0, k1, k1), jnp.float32),
        "b2": 0.1 * jax.random.normal(ks[8], (C1,), jnp.float32),
        "wlin": (1.0 / jnp.sqrt(L)) * jax.random.normal(ks[9], (n_units, L), jnp.float32),
        "scale": 1.0 + 0.1 * jax.random.normal(ks[10], (n_units,), jnp.float32),
        "shift": 0.1 * jax.random.normal(ks[11], (n_units,), jnp.float32),
    }

    xs = jax.random.normal(ks[12], (T, B, Cin, H, W), jnp.float32)
    h_bi = 0.1 * jax.random.normal(ks[13], (B, C0, H2, W2), jnp.float32)
    h_am = 0.1 * jax.random.normal(ks[14], (B, R, H2, W2), jnp.float32)

    run = make_skip_amac_rnn(P, B=B, Cin=Cin, H=H, W=W, T=T)   # prep once
    gang, hbi_fin, ham_fin = run(xs, h_bi, h_am)
    jax.block_until_ready(gang)
    jax.block_until_ready(hbi_fin)
    jax.block_until_ready(ham_fin)

    gang_r, (hbi_r, ham_r) = reference_sequence(xs, (h_bi, h_am), P)
    # Tolerance covers the explicit bf16 MXU operands (f32 accumulate) in the
    # kernel vs. the HIGHEST-precision reference over T=8 recurrent steps;
    # genuine bugs would show as O(0.1..1) errors.
    for a, b in ((gang, gang_r), (hbi_fin, hbi_r), (ham_fin, ham_r)):
        assert a.shape == b.shape, "shape mismatch vs. reference"
        assert jnp.allclose(a, b, atol=2e-2, rtol=2e-2), "mismatch vs. reference"

    print("KERNEL_OK")
</pallas_src>

<mosaic_0001>
module attributes {stable_mosaic.version = 11 : i64} {
  func.func @k(%arg0: memref<8x128xf32, #tpu.memory_space<vmem>>, %arg1: memref<8x128xf32, #tpu.memory_space<vmem>>) attributes {dimension_semantics = [], scalar_prefetch = 0 : i64, scratch_operands = 0 : i64, tpu.core_type = #tpu.core_type<tc>} {
    %c0 = arith.constant 0 : index
    %c0_0 = arith.constant 0 : index
    %0 = vector.load %arg0[%c0, %c0_0] : memref<8x128xf32, #tpu.memory_space<vmem>>, vector<8x128xf32>
    %c1_i32 = arith.constant 1 : i32
    %1 = tpu.dynamic_rotate %0 by %c1_i32 dim 1 : vector<8x128xf32>, i32 -> vector<8x128xf32>
    %c0_1 = arith.constant 0 : index
    %c0_2 = arith.constant 0 : index
    %2 = vector.load %arg1[%c0_1, %c0_2] : memref<8x128xf32, #tpu.memory_space<vmem>>, vector<8x128xf32>
    tpu.vector_store %arg1[%c0_1, %c0_2], %1 {strides = array<i32>} : memref<8x128xf32, #tpu.memory_space<vmem>>, vector<8x128xf32>,
    return
  }
}

module attributes {stable_mosaic.version = 11 : i64} {
  func.func @kernel(%arg0: i32, %arg1: memref<1x196x256xbf16, #tpu.memory_space<vmem>>, %arg2: memref<8x256xf32, #tpu.memory_space<vmem>>, %arg3: memref<2x256xf32, #tpu.memory_space<vmem>>, %arg4: memref<8x196xbf16, #tpu.memory_space<vmem>>, %arg5: memref<8x1xf32, #tpu.memory_space<vmem>>, %arg6: memref<8x2x1xf32, #tpu.memory_space<vmem>>, %arg7: memref<2x2x1xf32, #tpu.memory_space<vmem>>, %arg8: memref<2x1xf32, #tpu.memory_space<vmem>>, %arg9: memref<2x8x1xf32, #tpu.memory_space<vmem>>, %arg10: memref<8x1xf32, #tpu.memory_space<vmem>>, %arg11: memref<8x200xbf16, #tpu.memory_space<vmem>>, %arg12: memref<8x1xf32, #tpu.memory_space<vmem>>, %arg13: memref<8x8x256xf32, #tpu.memory_space<vmem>>, %arg14: memref<8x8x256xf32, #tpu.memory_space<vmem>>, %arg15: memref<8x1xf32, #tpu.memory_space<vmem>>, %arg16: memref<8x1xf32, #tpu.memory_space<vmem>>, %arg17: memref<1x8x128xf32, #tpu.memory_space<vmem>>, %arg18: memref<8x256xf32, #tpu.memory_space<vmem>>, %arg19: memref<2x256xf32, #tpu.memory_space<vmem>>) attributes {dimension_semantics = [#tpu.dimension_semantics<arbitrary>], iteration_bounds = array<i64: 8>, scalar_prefetch = 0 : i64, scratch_operands = 0 : i64, tpu.core_type = #tpu.core_type<tc>, window_params = [{transform_indices = @transform_0, window_bounds = array<i64: 1, 196, 256>}, {pipeline_mode = #tpu.pipeline_mode<synchronous>, transform_indices = @transform_1, window_bounds = array<i64: 8, 256>}, {pipeline_mode = #tpu.pipeline_mode<synchronous>, transform_indices = @transform_2, window_bounds = array<i64: 2, 256>}, {pipeline_mode = #tpu.pipeline_mode<synchronous>, transform_indices = @transform_3, window_bounds = array<i64: 8, 196>}, {pipeline_mode = #tpu.pipeline_mode<synchronous>, transform_indices = @transform_4, window_bounds = array<i64: 8, 1>}, {pipeline_mode = #tpu.pipeline_mode<synchronous>, transform_indices = @transform_5, window_bounds = array<i64: 8, 2, 1>}, {pipeline_mode = #tpu.pipeline_mode<synchronous>, transform_indices = @transform_6, window_bounds = array<i64: 2, 2, 1>}, {pipeline_mode = #tpu.pipeline_mode<synchronous>, transform_indices = @transform_7, window_bounds = array<i64: 2, 1>}, {pipeline_mode = #tpu.pipeline_mode<synchronous>, transform_indices = @transform_8, window_bounds = array<i64: 2, 8, 1>}, {pipeline_mode = #tpu.pipeline_mode<synchronous>, transform_indices = @transform_9, window_bounds = array<i64: 8, 1>}, {pipeline_mode = #tpu.pipeline_mode<synchronous>, transform_indices = @transform_10, window_bounds = array<i64: 8, 200>}, {pipeline_mode = #tpu.pipeline_mode<synchronous>, transform_indices = @transform_11, window_bounds = array<i64: 8, 1>}, {pipeline_mode = #tpu.pipeline_mode<synchronous>, transform_indices = @transform_12, window_bounds = array<i64: 8, 8, 256>}, {pipeline_mode = #tpu.pipeline_mode<synchronous>, transform_indices = @transform_13, window_bounds = array<i64: 8, 8, 256>}, {pipeline_mode = #tpu.pipeline_mode<synchronous>, transform_indices = @transform_14, window_bounds = array<i64: 8, 1>}, {pipeline_mode = #tpu.pipeline_mode<synchronous>, transform_indices = @transform_15, window_bounds = array<i64: 8, 1>}, {transform_indices = @transform_16, window_bounds = array<i64: 1, 8, 128>}, {pipeline_mode = #tpu.pipeline_mode<synchronous>, transform_indices = @transform_17, window_bounds = array<i64: 8, 256>}, {pipeline_mode = #tpu.pipeline_mode<synchronous>, transform_indices = @transform_18, window_bounds = array<i64: 2, 256>}]} {
    %c0_i32 = arith.constant 0 : i32
    %0 = arith.cmpi eq, %arg0, %c0_i32 : i32
    %1 = arith.extui %0 : i1 to i32
    %c0_i32_0 = arith.constant 0 : i32
    %2 = arith.cmpi ne, %1, %c0_i32_0 : i32
    scf.if %2 {
      %c0_120 = arith.constant 0 : index
      %c0_121 = arith.constant 0 : index
      %329 = vector.load %arg2[%c0_120, %c0_121] : memref<8x256xf32, #tpu.memory_space<vmem>>, vector<8x256xf32>
      %c0_122 = arith.constant 0 : index
      %c0_123 = arith.constant 0 : index
      %330 = vector.load %arg18[%c0_122, %c0_123] : memref<8x256xf32, #tpu.memory_space<vmem>>, vector<8x256xf32>
      tpu.vector_store %arg18[%c0_122, %c0_123], %329 {strides = array<i32>} : memref<8x256xf32, #tpu.memory_space<vmem>>, vector<8x256xf32>,
      %c0_124 = arith.constant 0 : index
      %c0_125 = arith.constant 0 : index
      %331 = vector.load %arg3[%c0_124, %c0_125] : memref<2x256xf32, #tpu.memory_space<vmem>>, vector<2x256xf32>
      %c0_126 = arith.constant 0 : index
      %c0_127 = arith.constant 0 : index
      %332 = vector.load %arg19[%c0_126, %c0_127] : memref<2x256xf32, #tpu.memory_space<vmem>>, vector<2x256xf32>
      tpu.vector_store %arg19[%c0_126, %c0_127], %331 {strides = array<i32>} : memref<2x256xf32, #tpu.memory_space<vmem>>, vector<2x256xf32>,
    } else {
    }
    %3 = tpu.iota {dimensions = array<i32: 1>} : vector<1x256xi32>
    %c100_i32 = arith.constant 100 : i32
    %4 = vector.broadcast %c100_i32 : i32 to vector<1x256xi32>
    %5 = arith.cmpi slt, %3, %4 : vector<1x256xi32>
    %c128_i32 = arith.constant 128 : i32
    %6 = vector.broadcast %c128_i32 : i32 to vector<1x256xi32>
    %7 = arith.cmpi sge, %3, %6 : vector<1x256xi32>
    %c228_i32 = arith.constant 228 : i32
    %8 = vector.broadcast %c228_i32 : i32 to vector<1x256xi32>
    %9 = arith.cmpi slt, %3, %8 : vector<1x256xi32>
    %10 = arith.andi %7, %9 : vector<1x256xi1>
    %11 = arith.ori %5, %10 : vector<1x256xi1>
    %c0 = arith.constant 0 : index
    %c0_1 = arith.constant 0 : index
    %12 = vector.load %arg4[%c0, %c0_1] : memref<8x196xbf16, #tpu.memory_space<vmem>>, vector<8x196xbf16>
    %c0_2 = arith.constant 0 : index
    %c0_3 = arith.constant 0 : index
    %c0_4 = arith.constant 0 : index
    %13 = vector.load %arg1[%c0_2, %c0_3, %c0_4] : memref<1x196x256xbf16, #tpu.memory_space<vmem>>, vector<1x196x256xbf16>
    %14 = vector.shape_cast %13 : vector<1x196x256xbf16> to vector<196x256xbf16>
    %cst = arith.constant dense<0.000000e+00> : vector<8x256xf32>
    %15 = tpu.matmul %12, %14, %cst {dimension_numbers = #tpu.dot_dimension_numbers<[1], [0], [0], [1], [0, 0, 1, 1], [], []>} : vector<8x196xbf16>, vector<196x256xbf16>, vector<8x256xf32> -> vector<8x256xf32>
    %c0_5 = arith.constant 0 : index
    %c0_6 = arith.constant 0 : index
    %16 = vector.load %arg5[%c0_5, %c0_6] : memref<8x1xf32, #tpu.memory_space<vmem>>, vector<8x1xf32>
    %17 = vector.broadcast %16 : vector<8x1xf32> to vector<8x256xf32>
    %18 = arith.addf %15, %17 : vector<8x256xf32>
    %c0_7 = arith.constant 0 : index
    %c0_8 = arith.constant 0 : index
    %19 = vector.load %arg18[%c0_7, %c0_8] : memref<8x256xf32, #tpu.memory_space<vmem>>, vector<8x256xf32>
    %20 = arith.addf %18, %19 : vector<8x256xf32>
    %cst_9 = arith.constant 0.000000e+00 : f32
    %21 = vector.broadcast %cst_9 : f32 to vector<8x256xf32>
    %22 = arith.maximumf %20, %21 : vector<8x256xf32>
    %cst_10 = arith.constant 0.000000e+00 : f32
    %23 = vector.shape_cast %11 : vector<1x256xi1> to vector<1x256xi1>
    %24 = vector.broadcast %23 : vector<1x256xi1> to vector<8x256xi1>
    %25 = vector.broadcast %cst_10 : f32 to vector<8x256xf32>
    %26 = arith.select %24, %22, %25 : vector<8x256xi1>, vector<8x256xf32>
    %c0_11 = arith.constant 0 : index
    %c0_12 = arith.constant 0 : index
    %27 = vector.load %arg19[%c0_11, %c0_12] : memref<2x256xf32, #tpu.memory_space<vmem>>, vector<2x256xf32>
    %cst_13 = arith.constant 0.000000e+00 : f32
    %28 = vector.broadcast %cst_13 : f32 to vector<2x256xf32>
    %c0_14 = arith.constant 0 : index
    %c0_15 = arith.constant 0 : index
    %c0_16 = arith.constant 0 : index
    %29 = vector.load %arg6[%c0_14, %c0_15, %c0_16] : memref<8x2x1xf32, #tpu.memory_space<vmem>>, vector<1x2x1xf32>
    %30 = vector.shape_cast %29 : vector<1x2x1xf32> to vector<2x1xf32>
    %31 = vector.extract_strided_slice %26 {offsets = [0, 0], sizes = [1, 256], strides = [1, 1]} : vector<8x256xf32> to vector<1x256xf32>
    %32 = vector.broadcast %30 : vector<2x1xf32> to vector<2x256xf32>
    %33 = vector.broadcast %31 : vector<1x256xf32> to vector<2x256xf32>
    %34 = arith.mulf %32, %33 : vector<2x256xf32>
    %35 = arith.addf %28, %34 : vector<2x256xf32>
    %c1 = arith.constant 1 : index
    %c0_17 = arith.constant 0 : index
    %c0_18 = arith.constant 0 : index
    %36 = vector.load %arg6[%c1, %c0_17, %c0_18] : memref<8x2x1xf32, #tpu.memory_space<vmem>>, vector<1x2x1xf32>
    %37 = vector.shape_cast %36 : vector<1x2x1xf32> to vector<2x1xf32>
    %38 = vector.extract_strided_slice %26 {offsets = [1, 0], sizes = [1, 256], strides = [1, 1]} : vector<8x256xf32> to vector<1x256xf32>
    %39 = vector.broadcast %37 : vector<2x1xf32> to vector<2x256xf32>
    %40 = vector.broadcast %38 : vector<1x256xf32> to vector<2x256xf32>
    %41 = arith.mulf %39, %40 : vector<2x256xf32>
    %42 = arith.addf %35, %41 : vector<2x256xf32>
    %c2 = arith.constant 2 : index
    %c0_19 = arith.constant 0 : index
    %c0_20 = arith.constant 0 : index
    %43 = vector.load %arg6[%c2, %c0_19, %c0_20] : memref<8x2x1xf32, #tpu.memory_space<vmem>>, vector<1x2x1xf32>
    %44 = vector.shape_cast %43 : vector<1x2x1xf32> to vector<2x1xf32>
    %45 = vector.extract_strided_slice %26 {offsets = [2, 0], sizes = [1, 256], strides = [1, 1]} : vector<8x256xf32> to vector<1x256xf32>
    %46 = vector.broadcast %44 : vector<2x1xf32> to vector<2x256xf32>
    %47 = vector.broadcast %45 : vector<1x256xf32> to vector<2x256xf32>
    %48 = arith.mulf %46, %47 : vector<2x256xf32>
    %49 = arith.addf %42, %48 : vector<2x256xf32>
    %c3 = arith.constant 3 : index
    %c0_21 = arith.constant 0 : index
    %c0_22 = arith.constant 0 : index
    %50 = vector.load %arg6[%c3, %c0_21, %c0_22] : memref<8x2x1xf32, #tpu.memory_space<vmem>>, vector<1x2x1xf32>
    %51 = vector.shape_cast %50 : vector<1x2x1xf32> to vector<2x1xf32>
    %52 = vector.extract_strided_slice %26 {offsets = [3, 0], sizes = [1, 256], strides = [1, 1]} : vector<8x256xf32> to vector<1x256xf32>
    %53 = vector.broadcast %51 : vector<2x1xf32> to vector<2x256xf32>
    %54 = vector.broadcast %52 : vector<1x256xf32> to vector<2x256xf32>
    %55 = arith.mulf %53, %54 : vector<2x256xf32>
    %56 = arith.addf %49, %55 : vector<2x256xf32>
    %c4 = arith.constant 4 : index
    %c0_23 = arith.constant 0 : index
    %c0_24 = arith.constant 0 : index
    %57 = vector.load %arg6[%c4, %c0_23, %c0_24] : memref<8x2x1xf32, #tpu.memory_space<vmem>>, vector<1x2x1xf32>
    %58 = vector.shape_cast %57 : vector<1x2x1xf32> to vector<2x1xf32>
    %59 = vector.extract_strided_slice %26 {offsets = [4, 0], sizes = [1, 256], strides = [1, 1]} : vector<8x256xf32> to vector<1x256xf32>
    %60 = vector.broadcast %58 : vector<2x1xf32> to vector<2x256xf32>
    %61 = vector.broadcast %59 : vector<1x256xf32> to vector<2x256xf32>
    %62 = arith.mulf %60, %61 : vector<2x256xf32>
    %63 = arith.addf %56, %62 : vector<2x256xf32>
    %c5 = arith.constant 5 : index
    %c0_25 = arith.constant 0 : index
    %c0_26 = arith.constant 0 : index
    %64 = vector.load %arg6[%c5, %c0_25, %c0_26] : memref<8x2x1xf32, #tpu.memory_space<vmem>>, vector<1x2x1xf32>
    %65 = vector.shape_cast %64 : vector<1x2x1xf32> to vector<2x1xf32>
    %66 = vector.extract_strided_slice %26 {offsets = [5, 0], sizes = [1, 256], strides = [1, 1]} : vector<8x256xf32> to vector<1x256xf32>
    %67 = vector.broadcast %65 : vector<2x1xf32> to vector<2x256xf32>
    %68 = vector.broadcast %66 : vector<1x256xf32> to vector<2x256xf32>
    %69 = arith.mulf %67, %68 : vector<2x256xf32>
    %70 = arith.addf %63, %69 : vector<2x256xf32>
    %c6 = arith.constant 6 : index
    %c0_27 = arith.constant 0 : index
    %c0_28 = arith.constant 0 : index
    %71 = vector.load %arg6[%c6, %c0_27, %c0_28] : memref<8x2x1xf32, #tpu.memory_space<vmem>>, vector<1x2x1xf32>
    %72 = vector.shape_cast %71 : vector<1x2x1xf32> to vector<2x1xf32>
    %73 = vector.extract_strided_slice %26 {offsets = [6, 0], sizes = [1, 256], strides = [1, 1]} : vector<8x256xf32> to vector<1x256xf32>
    %74 = vector.broadcast %72 : vector<2x1xf32> to vector<2x256xf32>
    %75 = vector.broadcast %73 : vector<1x256xf32> to vector<2x256xf32>
    %76 = arith.mulf %74, %75 : vector<2x256xf32>
    %77 = arith.addf %70, %76 : vector<2x256xf32>
    %c7 = arith.constant 7 : index
    %c0_29 = arith.constant 0 : index
    %c0_30 = arith.constant 0 : index
    %78 = vector.load %arg6[%c7, %c0_29, %c0_30] : memref<8x2x1xf32, #tpu.memory_space<vmem>>, vector<1x2x1xf32>
    %79 = vector.shape_cast %78 : vector<1x2x1xf32> to vector<2x1xf32>
    %80 = vector.extract_strided_slice %26 {offsets = [7, 0], sizes = [1, 256], strides = [1, 1]} : vector<8x256xf32> to vector<1x256xf32>
    %81 = vector.broadcast %79 : vector<2x1xf32> to vector<2x256xf32>
    %82 = vector.broadcast %80 : vector<1x256xf32> to vector<2x256xf32>
    %83 = arith.mulf %81, %82 : vector<2x256xf32>
    %84 = arith.addf %77, %83 : vector<2x256xf32>
    %c0_31 = arith.constant 0 : index
    %c0_32 = arith.constant 0 : index
    %c0_33 = arith.constant 0 : index
    %85 = vector.load %arg7[%c0_31, %c0_32, %c0_33] : memref<2x2x1xf32, #tpu.memory_space<vmem>>, vector<1x2x1xf32>
    %86 = vector.shape_cast %85 : vector<1x2x1xf32> to vector<2x1xf32>
    %87 = vector.extract_strided_slice %27 {offsets = [0, 0], sizes = [1, 256], strides = [1, 1]} : vector<2x256xf32> to vector<1x256xf32>
    %88 = vector.broadcast %86 : vector<2x1xf32> to vector<2x256xf32>
    %89 = vector.broadcast %87 : vector<1x256xf32> to vector<2x256xf32>
    %90 = arith.mulf %88, %89 : vector<2x256xf32>
    %91 = arith.addf %84, %90 : vector<2x256xf32>
    %c1_34 = arith.constant 1 : index
    %c0_35 = arith.constant 0 : index
    %c0_36 = arith.constant 0 : index
    %92 = vector.load %arg7[%c1_34, %c0_35, %c0_36] : memref<2x2x1xf32, #tpu.memory_space<vmem>>, vector<1x2x1xf32>
    %93 = vector.shape_cast %92 : vector<1x2x1xf32> to vector<2x1xf32>
    %94 = vector.extract_strided_slice %27 {offsets = [1, 0], sizes = [1, 256], strides = [1, 1]} : vector<2x256xf32> to vector<1x256xf32>
    %95 = vector.broadcast %93 : vector<2x1xf32> to vector<2x256xf32>
    %96 = vector.broadcast %94 : vector<1x256xf32> to vector<2x256xf32>
    %97 = arith.mulf %95, %96 : vector<2x256xf32>
    %98 = arith.addf %91, %97 : vector<2x256xf32>
    %c0_37 = arith.constant 0 : index
    %c0_38 = arith.constant 0 : index
    %99 = vector.load %arg8[%c0_37, %c0_38] : memref<2x1xf32, #tpu.memory_space<vmem>>, vector<2x1xf32>
    %100 = vector.broadcast %99 : vector<2x1xf32> to vector<2x256xf32>
    %101 = arith.addf %98, %100 : vector<2x256xf32>
    %102 = math.tanh %101 : vector<2x256xf32>
    %cst_39 = arith.constant 0.000000e+00 : f32
    %103 = vector.broadcast %cst_39 : f32 to vector<8x256xf32>
    %c0_40 = arith.constant 0 : index
    %c0_41 = arith.constant 0 : index
    %c0_42 = arith.constant 0 : index
    %104 = vector.load %arg9[%c0_40, %c0_41, %c0_42] : memref<2x8x1xf32, #tpu.memory_space<vmem>>, vector<1x8x1xf32>
    %105 = vector.shape_cast %104 : vector<1x8x1xf32> to vector<8x1xf32>
    %106 = vector.extract_strided_slice %102 {offsets = [0, 0], sizes = [1, 256], strides = [1, 1]} : vector<2x256xf32> to vector<1x256xf32>
    %107 = vector.broadcast %105 : vector<8x1xf32> to vector<8x256xf32>
    %108 = vector.broadcast %106 : vector<1x256xf32> to vector<8x256xf32>
    %109 = arith.mulf %107, %108 : vector<8x256xf32>
    %110 = arith.addf %103, %109 : vector<8x256xf32>
    %c1_43 = arith.constant 1 : index
    %c0_44 = arith.constant 0 : index
    %c0_45 = arith.constant 0 : index
    %111 = vector.load %arg9[%c1_43, %c0_44, %c0_45] : memref<2x8x1xf32, #tpu.memory_space<vmem>>, vector<1x8x1xf32>
    %112 = vector.shape_cast %111 : vector<1x8x1xf32> to vector<8x1xf32>
    %113 = vector.extract_strided_slice %102 {offsets = [1, 0], sizes = [1, 256], strides = [1, 1]} : vector<2x256xf32> to vector<1x256xf32>
    %114 = vector.broadcast %112 : vector<8x1xf32> to vector<8x256xf32>
    %115 = vector.broadcast %113 : vector<1x256xf32> to vector<8x256xf32>
    %116 = arith.mulf %114, %115 : vector<8x256xf32>
    %117 = arith.addf %110, %116 : vector<8x256xf32>
    %c0_46 = arith.constant 0 : index
    %c0_47 = arith.constant 0 : index
    %118 = vector.load %arg10[%c0_46, %c0_47] : memref<8x1xf32, #tpu.memory_space<vmem>>, vector<8x1xf32>
    %119 = vector.broadcast %118 : vector<8x1xf32> to vector<8x256xf32>
    %120 = arith.addf %117, %119 : vector<8x256xf32>
    %c0_48 = arith.constant 0 : index
    %c0_49 = arith.constant 0 : index
    %121 = vector.load %arg19[%c0_48, %c0_49] : memref<2x256xf32, #tpu.memory_space<vmem>>, vector<2x256xf32>
    tpu.vector_store %arg19[%c0_48, %c0_49], %102 {strides = array<i32>} : memref<2x256xf32, #tpu.memory_space<vmem>>, vector<2x256xf32>,
    %c0_50 = arith.constant 0 : index
    %c0_51 = arith.constant 0 : index
    %122 = vector.load %arg18[%c0_50, %c0_51] : memref<8x256xf32, #tpu.memory_space<vmem>>, vector<8x256xf32>
    tpu.vector_store %arg18[%c0_50, %c0_51], %120 {strides = array<i32>} : memref<8x256xf32, #tpu.memory_space<vmem>>, vector<8x256xf32>,
    %123 = vector.extract_strided_slice %26 {offsets = [0, 1], sizes = [8, 255], strides = [1, 1]} : vector<8x256xf32> to vector<8x255xf32>
    %124 = vector.extract_strided_slice %26 {offsets = [0, 0], sizes = [8, 1], strides = [1, 1]} : vector<8x256xf32> to vector<8x1xf32>
    %125 = tpu.concatenate %123, %124 in 1 : vector<8x255xf32>, vector<8x1xf32> -> vector<8x256xf32>
    %126 = vector.extract_strided_slice %26 {offsets = [0, 2], sizes = [8, 254], strides = [1, 1]} : vector<8x256xf32> to vector<8x254xf32>
    %127 = vector.extract_strided_slice %26 {offsets = [0, 0], sizes = [8, 2], strides = [1, 1]} : vector<8x256xf32> to vector<8x2xf32>
    %128 = tpu.concatenate %126, %127 in 1 : vector<8x254xf32>, vector<8x2xf32> -> vector<8x256xf32>
    %129 = vector.extract_strided_slice %26 {offsets = [0, 3], sizes = [8, 253], strides = [1, 1]} : vector<8x256xf32> to vector<8x253xf32>
    %130 = vector.extract_strided_slice %26 {offsets = [0, 0], sizes = [8, 3], strides = [1, 1]} : vector<8x256xf32> to vector<8x3xf32>
    %131 = tpu.concatenate %129, %130 in 1 : vector<8x253xf32>, vector<8x3xf32> -> vector<8x256xf32>
    %132 = vector.extract_strided_slice %26 {offsets = [0, 4], sizes = [8, 252], strides = [1, 1]} : vector<8x256xf32> to vector<8x252xf32>
    %133 = vector.extract_strided_slice %26 {offsets = [0, 0], sizes = [8, 4], strides = [1, 1]} : vector<8x256xf32> to vector<8x4xf32>
    %134 = tpu.concatenate %132, %133 in 1 : vector<8x252xf32>, vector<8x4xf32> -> vector<8x256xf32>
    %135 = vector.extract_strided_slice %26 {offsets = [0, 10], sizes = [8, 246], strides = [1, 1]} : vector<8x256xf32> to vector<8x246xf32>
    %136 = vector.extract_strided_slice %26 {offsets = [0, 0], sizes = [8, 10], strides = [1, 1]} : vector<8x256xf32> to vector<8x10xf32>
    %137 = tpu.concatenate %135, %136 in 1 : vector<8x246xf32>, vector<8x10xf32> -> vector<8x256xf32>
    %138 = vector.extract_strided_slice %26 {offsets = [0, 11], sizes = [8, 245], strides = [1, 1]} : vector<8x256xf32> to vector<8x245xf32>
    %139 = vector.extract_strided_slice %26 {offsets = [0, 0], sizes = [8, 11], strides = [1, 1]} : vector<8x256xf32> to vector<8x11xf32>
    %140 = tpu.concatenate %138, %139 in 1 : vector<8x245xf32>, vector<8x11xf32> -> vector<8x256xf32>
    %141 = vector.extract_strided_slice %26 {offsets = [0, 12], sizes = [8, 244], strides = [1, 1]} : vector<8x256xf32> to vector<8x244xf32>
    %142 = vector.extract_strided_slice %26 {offsets = [0, 0], sizes = [8, 12], strides = [1, 1]} : vector<8x256xf32> to vector<8x12xf32>
    %143 = tpu.concatenate %141, %142 in 1 : vector<8x244xf32>, vector<8x12xf32> -> vector<8x256xf32>
    %144 = vector.extract_strided_slice %26 {offsets = [0, 13], sizes = [8, 243], strides = [1, 1]} : vector<8x256xf32> to vector<8x243xf32>
    %145 = vector.extract_strided_slice %26 {offsets = [0, 0], sizes = [8, 13], strides = [1, 1]} : vector<8x256xf32> to vector<8x13xf32>
    %146 = tpu.concatenate %144, %145 in 1 : vector<8x243xf32>, vector<8x13xf32> -> vector<8x256xf32>
    %147 = vector.extract_strided_slice %26 {offsets = [0, 14], sizes = [8, 242], strides = [1, 1]} : vector<8x256xf32> to vector<8x242xf32>
    %148 = vector.extract_strided_slice %26 {offsets = [0, 0], sizes = [8, 14], strides = [1, 1]} : vector<8x256xf32> to vector<8x14xf32>
    %149 = tpu.concatenate %147, %148 in 1 : vector<8x242xf32>, vector<8x14xf32> -> vector<8x256xf32>
    %150 = vector.extract_strided_slice %26 {offsets = [0, 20], sizes = [8, 236], strides = [1, 1]} : vector<8x256xf32> to vector<8x236xf32>
    %151 = vector.extract_strided_slice %26 {offsets = [0, 0], sizes = [8, 20], strides = [1, 1]} : vector<8x256xf32> to vector<8x20xf32>
    %152 = tpu.concatenate %150, %151 in 1 : vector<8x236xf32>, vector<8x20xf32> -> vector<8x256xf32>
    %153 = vector.extract_strided_slice %26 {offsets = [0, 21], sizes = [8, 235], strides = [1, 1]} : vector<8x256xf32> to vector<8x235xf32>
    %154 = vector.extract_strided_slice %26 {offsets = [0, 0], sizes = [8, 21], strides = [1, 1]} : vector<8x256xf32> to vector<8x21xf32>
    %155 = tpu.concatenate %153, %154 in 1 : vector<8x235xf32>, vector<8x21xf32> -> vector<8x256xf32>
    %156 = vector.extract_strided_slice %26 {offsets = [0, 22], sizes = [8, 234], strides = [1, 1]} : vector<8x256xf32> to vector<8x234xf32>
    %157 = vector.extract_strided_slice %26 {offsets = [0, 0], sizes = [8, 22], strides = [1, 1]} : vector<8x256xf32> to vector<8x22xf32>
    %158 = tpu.concatenate %156, %157 in 1 : vector<8x234xf32>, vector<8x22xf32> -> vector<8x256xf32>
    %159 = vector.extract_strided_slice %26 {offsets = [0, 23], sizes = [8, 233], strides = [1, 1]} : vector<8x256xf32> to vector<8x233xf32>
    %160 = vector.extract_strided_slice %26 {offsets = [0, 0], sizes = [8, 23], strides = [1, 1]} : vector<8x256xf32> to vector<8x23xf32>
    %161 = tpu.concatenate %159, %160 in 1 : vector<8x233xf32>, vector<8x23xf32> -> vector<8x256xf32>
    %162 = vector.extract_strided_slice %26 {offsets = [0, 24], sizes = [8, 232], strides = [1, 1]} : vector<8x256xf32> to vector<8x232xf32>
    %163 = vector.extract_strided_slice %26 {offsets = [0, 0], sizes = [8, 24], strides = [1, 1]} : vector<8x256xf32> to vector<8x24xf32>
    %164 = tpu.concatenate %162, %163 in 1 : vector<8x232xf32>, vector<8x24xf32> -> vector<8x256xf32>
    %165 = vector.extract_strided_slice %26 {offsets = [0, 30], sizes = [8, 226], strides = [1, 1]} : vector<8x256xf32> to vector<8x226xf32>
    %166 = vector.extract_strided_slice %26 {offsets = [0, 0], sizes = [8, 30], strides = [1, 1]} : vector<8x256xf32> to vector<8x30xf32>
    %167 = tpu.concatenate %165, %166 in 1 : vector<8x226xf32>, vector<8x30xf32> -> vector<8x256xf32>
    %168 = vector.extract_strided_slice %26 {offsets = [0, 31], sizes = [8, 225], strides = [1, 1]} : vector<8x256xf32> to vector<8x225xf32>
    %169 = vector.extract_strided_slice %26 {offsets = [0, 0], sizes = [8, 31], strides = [1, 1]} : vector<8x256xf32> to vector<8x31xf32>
    %170 = tpu.concatenate %168, %169 in 1 : vector<8x225xf32>, vector<8x31xf32> -> vector<8x256xf32>
    %171 = vector.extract_strided_slice %26 {offsets = [0, 32], sizes = [8, 224], strides = [1, 1]} : vector<8x256xf32> to vector<8x224xf32>
    %172 = vector.extract_strided_slice %26 {offsets = [0, 0], sizes = [8, 32], strides = [1, 1]} : vector<8x256xf32> to vector<8x32xf32>
    %173 = tpu.concatenate %171, %172 in 1 : vector<8x224xf32>, vector<8x32xf32> -> vector<8x256xf32>
    %174 = vector.extract_strided_slice %26 {offsets = [0, 33], sizes = [8, 223], strides = [1, 1]} : vector<8x256xf32> to vector<8x223xf32>
    %175 = vector.extract_strided_slice %26 {offsets = [0, 0], sizes = [8, 33], strides = [1, 1]} : vector<8x256xf32> to vector<8x33xf32>
    %176 = tpu.concatenate %174, %175 in 1 : vector<8x223xf32>, vector<8x33xf32> -> vector<8x256xf32>
    %177 = vector.extract_strided_slice %26 {offsets = [0, 34], sizes = [8, 222], strides = [1, 1]} : vector<8x256xf32> to vector<8x222xf32>
    %178 = vector.extract_strided_slice %26 {offsets = [0, 0], sizes = [8, 34], strides = [1, 1]} : vector<8x256xf32> to vector<8x34xf32>
    %179 = tpu.concatenate %177, %178 in 1 : vector<8x222xf32>, vector<8x34xf32> -> vector<8x256xf32>
    %180 = vector.extract_strided_slice %26 {offsets = [0, 40], sizes = [8, 216], strides = [1, 1]} : vector<8x256xf32> to vector<8x216xf32>
    %181 = vector.extract_strided_slice %26 {offsets = [0, 0], sizes = [8, 40], strides = [1, 1]} : vector<8x256xf32> to vector<8x40xf32>
    %182 = tpu.concatenate %180, %181 in 1 : vector<8x216xf32>, vector<8x40xf32> -> vector<8x256xf32>
    %183 = vector.extract_strided_slice %26 {offsets = [0, 41], sizes = [8, 215], strides = [1, 1]} : vector<8x256xf32> to vector<8x215xf32>
    %184 = vector.extract_strided_slice %26 {offsets = [0, 0], sizes = [8, 41], strides = [1, 1]} : vector<8x256xf32> to vector<8x41xf32>
    %185 = tpu.concatenate %183, %184 in 1 : vector<8x215xf32>, vector<8x41xf32> -> vector<8x256xf32>
    %186 = vector.extract_strided_slice %26 {offsets = [0, 42], sizes = [8, 214], strides = [1, 1]} : vector<8x256xf32> to vector<8x214xf32>
    %187 = vector.extract_strided_slice %26 {offsets = [0, 0], sizes = [8, 42], strides = [1, 1]} : vector<8x256xf32> to vector<8x42xf32>
    %188 = tpu.concatenate %186, %187 in 1 : vector<8x214xf32>, vector<8x42xf32> -> vector<8x256xf32>
    %189 = vector.extract_strided_slice %26 {offsets = [0, 43], sizes = [8, 213], strides = [1, 1]} : vector<8x256xf32> to vector<8x213xf32>
    %190 = vector.extract_strided_slice %26 {offsets = [0, 0], sizes = [8, 43], strides = [1, 1]} : vector<8x256xf32> to vector<8x43xf32>
    %191 = tpu.concatenate %189, %190 in 1 : vector<8x213xf32>, vector<8x43xf32> -> vector<8x256xf32>
    %192 = vector.extract_strided_slice %26 {offsets = [0, 44], sizes = [8, 212], strides = [1, 1]} : vector<8x256xf32> to vector<8x212xf32>
    %193 = vector.extract_strided_slice %26 {offsets = [0, 0], sizes = [8, 44], strides = [1, 1]} : vector<8x256xf32> to vector<8x44xf32>
    %194 = tpu.concatenate %192, %193 in 1 : vector<8x212xf32>, vector<8x44xf32> -> vector<8x256xf32>
    %195 = tpu.concatenate %26, %125, %128, %131, %134, %137, %140, %143, %146, %149, %152, %155, %158, %161, %164, %167 in 0 : vector<8x256xf32>, vector<8x256xf32>, vector<8x256xf32>, vector<8x256xf32>, vector<8x256xf32>, vector<8x256xf32>, vector<8x256xf32>, vector<8x256xf32>, vector<8x256xf32>, vector<8x256xf32>, vector<8x256xf32>, vector<8x256xf32>, vector<8x256xf32>, vector<8x256xf32>, vector<8x256xf32>, vector<8x256xf32> -> vector<128x256xf32>
    %196 = tpu.concatenate %170, %173, %176, %179, %182, %185, %188, %191, %194 in 0 : vector<8x256xf32>, vector<8x256xf32>, vector<8x256xf32>, vector<8x256xf32>, vector<8x256xf32>, vector<8x256xf32>, vector<8x256xf32>, vector<8x256xf32>, vector<8x256xf32> -> vector<72x256xf32>
    %197 = tpu.concatenate %195, %196 in 0 : vector<128x256xf32>, vector<72x256xf32> -> vector<200x256xf32>
    %198 = arith.truncf %197 : vector<200x256xf32> to vector<200x256xbf16>
    %c0_52 = arith.constant 0 : index
    %c0_53 = arith.constant 0 : index
    %199 = vector.load %arg11[%c0_52, %c0_53] : memref<8x200xbf16, #tpu.memory_space<vmem>>, vector<8x200xbf16>
    %cst_54 = arith.constant dense<0.000000e+00> : vector<8x256xf32>
    %200 = tpu.matmul %199, %198, %cst_54 {dimension_numbers = #tpu.dot_dimension_numbers<[1], [0], [0], [1], [0, 0, 1, 1], [], []>} : vector<8x200xbf16>, vector<200x256xbf16>, vector<8x256xf32> -> vector<8x256xf32>
    %c0_55 = arith.constant 0 : index
    %c0_56 = arith.constant 0 : index
    %201 = vector.load %arg12[%c0_55, %c0_56] : memref<8x1xf32, #tpu.memory_space<vmem>>, vector<8x1xf32>
    %202 = vector.broadcast %201 : vector<8x1xf32> to vector<8x256xf32>
    %203 = arith.addf %200, %202 : vector<8x256xf32>
    %cst_57 = arith.constant 0.000000e+00 : f32
    %204 = vector.broadcast %cst_57 : f32 to vector<8x256xf32>
    %205 = arith.maximumf %203, %204 : vector<8x256xf32>
    %cst_58 = arith.constant 0.000000e+00 : f32
    %206 = vector.broadcast %cst_58 : f32 to vector<8x256xf32>
    %207 = arith.subf %206, %205 : vector<8x256xf32>
    %cst_59 = arith.constant 0.000000e+00 : f32
    %208 = vector.broadcast %cst_59 : f32 to vector<8x256xf32>
    %c0_60 = arith.constant 0 : index
    %c0_61 = arith.constant 0 : index
    %c0_62 = arith.constant 0 : index
    %209 = vector.load %arg13[%c0_60, %c0_61, %c0_62] : memref<8x8x256xf32, #tpu.memory_space<vmem>>, vector<1x8x256xf32>
    %210 = vector.shape_cast %209 : vector<1x8x256xf32> to vector<8x256xf32>
    %211 = vector.extract_strided_slice %26 {offsets = [0, 0], sizes = [1, 256], strides = [1, 1]} : vector<8x256xf32> to vector<1x256xf32>
    %212 = vector.broadcast %211 : vector<1x256xf32> to vector<8x256xf32>
    %213 = arith.mulf %210, %212 : vector<8x256xf32>
    %214 = arith.addf %208, %213 : vector<8x256xf32>
    %c1_63 = arith.constant 1 : index
    %c0_64 = arith.constant 0 : index
    %c0_65 = arith.constant 0 : index
    %215 = vector.load %arg13[%c1_63, %c0_64, %c0_65] : memref<8x8x256xf32, #tpu.memory_space<vmem>>, vector<1x8x256xf32>
    %216 = vector.shape_cast %215 : vector<1x8x256xf32> to vector<8x256xf32>
    %217 = vector.extract_strided_slice %26 {offsets = [1, 0], sizes = [1, 256], strides = [1, 1]} : vector<8x256xf32> to vector<1x256xf32>
    %218 = vector.broadcast %217 : vector<1x256xf32> to vector<8x256xf32>
    %219 = arith.mulf %216, %218 : vector<8x256xf32>
    %220 = arith.addf %214, %219 : vector<8x256xf32>
    %c2_66 = arith.constant 2 : index
    %c0_67 = arith.constant 0 : index
    %c0_68 = arith.constant 0 : index
    %221 = vector.load %arg13[%c2_66, %c0_67, %c0_68] : memref<8x8x256xf32, #tpu.memory_space<vmem>>, vector<1x8x256xf32>
    %222 = vector.shape_cast %221 : vector<1x8x256xf32> to vector<8x256xf32>
    %223 = vector.extract_strided_slice %26 {offsets = [2, 0], sizes = [1, 256], strides = [1, 1]} : vector<8x256xf32> to vector<1x256xf32>
    %224 = vector.broadcast %223 : vector<1x256xf32> to vector<8x256xf32>
    %225 = arith.mulf %222, %224 : vector<8x256xf32>
    %226 = arith.addf %220, %225 : vector<8x256xf32>
    %c3_69 = arith.constant 3 : index
    %c0_70 = arith.constant 0 : index
    %c0_71 = arith.constant 0 : index
    %227 = vector.load %arg13[%c3_69, %c0_70, %c0_71] : memref<8x8x256xf32, #tpu.memory_space<vmem>>, vector<1x8x256xf32>
    %228 = vector.shape_cast %227 : vector<1x8x256xf32> to vector<8x256xf32>
    %229 = vector.extract_strided_slice %26 {offsets = [3, 0], sizes = [1, 256], strides = [1, 1]} : vector<8x256xf32> to vector<1x256xf32>
    %230 = vector.broadcast %229 : vector<1x256xf32> to vector<8x256xf32>
    %231 = arith.mulf %228, %230 : vector<8x256xf32>
    %232 = arith.addf %226, %231 : vector<8x256xf32>
    %c4_72 = arith.constant 4 : index
    %c0_73 = arith.constant 0 : index
    %c0_74 = arith.constant 0 : index
    %233 = vector.load %arg13[%c4_72, %c0_73, %c0_74] : memref<8x8x256xf32, #tpu.memory_space<vmem>>, vector<1x8x256xf32>
    %234 = vector.shape_cast %233 : vector<1x8x256xf32> to vector<8x256xf32>
    %235 = vector.extract_strided_slice %26 {offsets = [4, 0], sizes = [1, 256], strides = [1, 1]} : vector<8x256xf32> to vector<1x256xf32>
    %236 = vector.broadcast %235 : vector<1x256xf32> to vector<8x256xf32>
    %237 = arith.mulf %234, %236 : vector<8x256xf32>
    %238 = arith.addf %232, %237 : vector<8x256xf32>
    %c5_75 = arith.constant 5 : index
    %c0_76 = arith.constant 0 : index
    %c0_77 = arith.constant 0 : index
    %239 = vector.load %arg13[%c5_75, %c0_76, %c0_77] : memref<8x8x256xf32, #tpu.memory_space<vmem>>, vector<1x8x256xf32>
    %240 = vector.shape_cast %239 : vector<1x8x256xf32> to vector<8x256xf32>
    %241 = vector.extract_strided_slice %26 {offsets = [5, 0], sizes = [1, 256], strides = [1, 1]} : vector<8x256xf32> to vector<1x256xf32>
    %242 = vector.broadcast %241 : vector<1x256xf32> to vector<8x256xf32>
    %243 = arith.mulf %240, %242 : vector<8x256xf32>
    %244 = arith.addf %238, %243 : vector<8x256xf32>
    %c6_78 = arith.constant 6 : index
    %c0_79 = arith.constant 0 : index
    %c0_80 = arith.constant 0 : index
    %245 = vector.load %arg13[%c6_78, %c0_79, %c0_80] : memref<8x8x256xf32, #tpu.memory_space<vmem>>, vector<1x8x256xf32>
    %246 = vector.shape_cast %245 : vector<1x8x256xf32> to vector<8x256xf32>
    %247 = vector.extract_strided_slice %26 {offsets = [6, 0], sizes = [1, 256], strides = [1, 1]} : vector<8x256xf32> to vector<1x256xf32>
    %248 = vector.broadcast %247 : vector<1x256xf32> to vector<8x256xf32>
    %249 = arith.mulf %246, %248 : vector<8x256xf32>
    %250 = arith.addf %244, %249 : vector<8x256xf32>
    %c7_81 = arith.constant 7 : index
    %c0_82 = arith.constant 0 : index
    %c0_83 = arith.constant 0 : index
    %251 = vector.load %arg13[%c7_81, %c0_82, %c0_83] : memref<8x8x256xf32, #tpu.memory_space<vmem>>, vector<1x8x256xf32>
    %252 = vector.shape_cast %251 : vector<1x8x256xf32> to vector<8x256xf32>
    %253 = vector.extract_strided_slice %26 {offsets = [7, 0], sizes = [1, 256], strides = [1, 1]} : vector<8x256xf32> to vector<1x256xf32>
    %254 = vector.broadcast %253 : vector<1x256xf32> to vector<8x256xf32>
    %255 = arith.mulf %252, %254 : vector<8x256xf32>
    %256 = arith.addf %250, %255 : vector<8x256xf32>
    %c0_84 = arith.constant 0 : index
    %c0_85 = arith.constant 0 : index
    %c0_86 = arith.constant 0 : index
    %257 = vector.load %arg14[%c0_84, %c0_85, %c0_86] : memref<8x8x256xf32, #tpu.memory_space<vmem>>, vector<1x8x256xf32>
    %258 = vector.shape_cast %257 : vector<1x8x256xf32> to vector<8x256xf32>
    %259 = vector.extract_strided_slice %207 {offsets = [0, 0], sizes = [1, 256], strides = [1, 1]} : vector<8x256xf32> to vector<1x256xf32>
    %260 = vector.broadcast %259 : vector<1x256xf32> to vector<8x256xf32>
    %261 = arith.mulf %258, %260 : vector<8x256xf32>
    %262 = arith.addf %256, %261 : vector<8x256xf32>
    %c1_87 = arith.constant 1 : index
    %c0_88 = arith.constant 0 : index
    %c0_89 = arith.constant 0 : index
    %263 = vector.load %arg14[%c1_87, %c0_88, %c0_89] : memref<8x8x256xf32, #tpu.memory_space<vmem>>, vector<1x8x256xf32>
    %264 = vector.shape_cast %263 : vector<1x8x256xf32> to vector<8x256xf32>
    %265 = vector.extract_strided_slice %207 {offsets = [1, 0], sizes = [1, 256], strides = [1, 1]} : vector<8x256xf32> to vector<1x256xf32>
    %266 = vector.broadcast %265 : vector<1x256xf32> to vector<8x256xf32>
    %267 = arith.mulf %264, %266 : vector<8x256xf32>
    %268 = arith.addf %262, %267 : vector<8x256xf32>
    %c2_90 = arith.constant 2 : index
    %c0_91 = arith.constant 0 : index
    %c0_92 = arith.constant 0 : index
    %269 = vector.load %arg14[%c2_90, %c0_91, %c0_92] : memref<8x8x256xf32, #tpu.memory_space<vmem>>, vector<1x8x256xf32>
    %270 = vector.shape_cast %269 : vector<1x8x256xf32> to vector<8x256xf32>
    %271 = vector.extract_strided_slice %207 {offsets = [2, 0], sizes = [1, 256], strides = [1, 1]} : vector<8x256xf32> to vector<1x256xf32>
    %272 = vector.broadcast %271 : vector<1x256xf32> to vector<8x256xf32>
    %273 = arith.mulf %270, %272 : vector<8x256xf32>
    %274 = arith.addf %268, %273 : vector<8x256xf32>
    %c3_93 = arith.constant 3 : index
    %c0_94 = arith.constant 0 : index
    %c0_95 = arith.constant 0 : index
    %275 = vector.load %arg14[%c3_93, %c0_94, %c0_95] : memref<8x8x256xf32, #tpu.memory_space<vmem>>, vector<1x8x256xf32>
    %276 = vector.shape_cast %275 : vector<1x8x256xf32> to vector<8x256xf32>
    %277 = vector.extract_strided_slice %207 {offsets = [3, 0], sizes = [1, 256], strides = [1, 1]} : vector<8x256xf32> to vector<1x256xf32>
    %278 = vector.broadcast %277 : vector<1x256xf32> to vector<8x256xf32>
    %279 = arith.mulf %276, %278 : vector<8x256xf32>
    %280 = arith.addf %274, %279 : vector<8x256xf32>
    %c4_96 = arith.constant 4 : index
    %c0_97 = arith.constant 0 : index
    %c0_98 = arith.constant 0 : index
    %281 = vector.load %arg14[%c4_96, %c0_97, %c0_98] : memref<8x8x256xf32, #tpu.memory_space<vmem>>, vector<1x8x256xf32>
    %282 = vector.shape_cast %281 : vector<1x8x256xf32> to vector<8x256xf32>
    %283 = vector.extract_strided_slice %207 {offsets = [4, 0], sizes = [1, 256], strides = [1, 1]} : vector<8x256xf32> to vector<1x256xf32>
    %284 = vector.broadcast %283 : vector<1x256xf32> to vector<8x256xf32>
    %285 = arith.mulf %282, %284 : vector<8x256xf32>
    %286 = arith.addf %280, %285 : vector<8x256xf32>
    %c5_99 = arith.constant 5 : index
    %c0_100 = arith.constant 0 : index
    %c0_101 = arith.constant 0 : index
    %287 = vector.load %arg14[%c5_99, %c0_100, %c0_101] : memref<8x8x256xf32, #tpu.memory_space<vmem>>, vector<1x8x256xf32>
    %288 = vector.shape_cast %287 : vector<1x8x256xf32> to vector<8x256xf32>
    %289 = vector.extract_strided_slice %207 {offsets = [5, 0], sizes = [1, 256], strides = [1, 1]} : vector<8x256xf32> to vector<1x256xf32>
    %290 = vector.broadcast %289 : vector<1x256xf32> to vector<8x256xf32>
    %291 = arith.mulf %288, %290 : vector<8x256xf32>
    %292 = arith.addf %286, %291 : vector<8x256xf32>
    %c6_102 = arith.constant 6 : index
    %c0_103 = arith.constant 0 : index
    %c0_104 = arith.constant 0 : index
    %293 = vector.load %arg14[%c6_102, %c0_103, %c0_104] : memref<8x8x256xf32, #tpu.memory_space<vmem>>, vector<1x8x256xf32>
    %294 = vector.shape_cast %293 : vector<1x8x256xf32> to vector<8x256xf32>
    %295 = vector.extract_strided_slice %207 {offsets = [6, 0], sizes = [1, 256], strides = [1, 1]} : vector<8x256xf32> to vector<1x256xf32>
    %296 = vector.broadcast %295 : vector<1x256xf32> to vector<8x256xf32>
    %297 = arith.mulf %294, %296 : vector<8x256xf32>
    %298 = arith.addf %292, %297 : vector<8x256xf32>
    %c7_105 = arith.constant 7 : index
    %c0_106 = arith.constant 0 : index
    %c0_107 = arith.constant 0 : index
    %299 = vector.load %arg14[%c7_105, %c0_106, %c0_107] : memref<8x8x256xf32, #tpu.memory_space<vmem>>, vector<1x8x256xf32>
    %300 = vector.shape_cast %299 : vector<1x8x256xf32> to vector<8x256xf32>
    %301 = vector.extract_strided_slice %207 {offsets = [7, 0], sizes = [1, 256], strides = [1, 1]} : vector<8x256xf32> to vector<1x256xf32>
    %302 = vector.broadcast %301 : vector<1x256xf32> to vector<8x256xf32>
    %303 = arith.mulf %300, %302 : vector<8x256xf32>
    %304 = arith.addf %298, %303 : vector<8x256xf32>
    %305 = vector.extract_strided_slice %304 {offsets = [0, 0], sizes = [8, 128], strides = [1, 1]} : vector<8x256xf32> to vector<8x128xf32>
    %cst_108 = arith.constant dense<0.000000e+00> : vector<8xf32>
    %306 = vector.multi_reduction <add>, %305, %cst_108 [1] : vector<8x128xf32> to vector<8xf32>
    %307 = vector.shape_cast %306 : vector<8xf32> to vector<8x1xf32>
    %308 = vector.extract_strided_slice %304 {offsets = [0, 128], sizes = [8, 128], strides = [1, 1]} : vector<8x256xf32> to vector<8x128xf32>
    %cst_109 = arith.constant dense<0.000000e+00> : vector<8xf32>
    %309 = vector.multi_reduction <add>, %308, %cst_109 [1] : vector<8x128xf32> to vector<8xf32>
    %310 = vector.shape_cast %309 : vector<8xf32> to vector<8x1xf32>
    %cst_110 = arith.constant 0.000000e+00 : f32
    %311 = vector.broadcast %cst_110 : f32 to vector<8x126xf32>
    %312 = tpu.concatenate %307, %310, %311 in 1 : vector<8x1xf32>, vector<8x1xf32>, vector<8x126xf32> -> vector<8x128xf32>
    %c0_111 = arith.constant 0 : index
    %c0_112 = arith.constant 0 : index
    %313 = vector.load %arg15[%c0_111, %c0_112] : memref<8x1xf32, #tpu.memory_space<vmem>>, vector<8x1xf32>
    %314 = vector.broadcast %313 : vector<8x1xf32> to vector<8x128xf32>
    %315 = arith.mulf %312, %314 : vector<8x128xf32>
    %c0_113 = arith.constant 0 : index
    %c0_114 = arith.constant 0 : index
    %316 = vector.load %arg16[%c0_113, %c0_114] : memref<8x1xf32, #tpu.memory_space<vmem>>, vector<8x1xf32>
    %317 = vector.broadcast %316 : vector<8x1xf32> to vector<8x128xf32>
    %318 = arith.addf %315, %317 : vector<8x128xf32>
    %cst_115 = arith.constant 2.000000e+01 : f32
    %319 = vector.broadcast %cst_115 : f32 to vector<8x128xf32>
    %320 = arith.cmpf ogt, %318, %319 : vector<8x128xf32>
    %cst_116 = arith.constant 2.000000e+01 : f32
    %321 = vector.broadcast %cst_116 : f32 to vector<8x128xf32>
    %322 = arith.minimumf %318, %321 : vector<8x128xf32>
    %323 = math.exp %322 : vector<8x128xf32>
    %324 = math.log1p %323 : vector<8x128xf32>
    %325 = arith.select %320, %318, %324 : vector<8x128xi1>, vector<8x128xf32>
    %c0_117 = arith.constant 0 : index
    %c0_118 = arith.constant 0 : index
    %c0_119 = arith.constant 0 : index
    %326 = vector.load %arg17[%c0_117, %c0_118, %c0_119] : memref<1x8x128xf32, #tpu.memory_space<vmem>>, vector<1x8x128xf32>
    %327 = vector.shape_cast %326 : vector<1x8x128xf32> to vector<8x128xf32>
    %328 = vector.shape_cast %325 : vector<8x128xf32> to vector<1x8x128xf32>
    tpu.vector_store %arg17[%c0_117, %c0_118, %c0_119], %328 {strides = array<i32>} : memref<1x8x128xf32, #tpu.memory_space<vmem>>, vector<1x8x128xf32>,
    return
  }
  func.func @transform_0(%arg0: i32) -> (i32, i32, i32) {
    %c0_i32 = arith.constant 0 : i32
    %c0_i32_0 = arith.constant 0 : i32
    %c0_i32_1 = arith.constant 0 : i32
    return %arg0, %c0_i32, %c0_i32_0 : i32, i32, i32
  }
  func.func @transform_1(%arg0: i32) -> (i32, i32) {
    %c0_i32 = arith.constant 0 : i32
    %c0_i32_0 = arith.constant 0 : i32
    %c0_i32_1 = arith.constant 0 : i32
    return %c0_i32, %c0_i32_0 : i32, i32
  }
  func.func @transform_2(%arg0: i32) -> (i32, i32) {
    %c0_i32 = arith.constant 0 : i32
    %c0_i32_0 = arith.constant 0 : i32
    %c0_i32_1 = arith.constant 0 : i32
    return %c0_i32, %c0_i32_0 : i32, i32
  }
  func.func @transform_3(%arg0: i32) -> (i32, i32) {
    %c0_i32 = arith.constant 0 : i32
    %c0_i32_0 = arith.constant 0 : i32
    %c0_i32_1 = arith.constant 0 : i32
    return %c0_i32, %c0_i32_0 : i32, i32
  }
  func.func @transform_4(%arg0: i32) -> (i32, i32) {
    %c0_i32 = arith.constant 0 : i32
    %c0_i32_0 = arith.constant 0 : i32
    %c0_i32_1 = arith.constant 0 : i32
    return %c0_i32, %c0_i32_0 : i32, i32
  }
  func.func @transform_5(%arg0: i32) -> (i32, i32, i32) {
    %c0_i32 = arith.constant 0 : i32
    %c0_i32_0 = arith.constant 0 : i32
    %c0_i32_1 = arith.constant 0 : i32
    %c0_i32_2 = arith.constant 0 : i32
    return %c0_i32, %c0_i32_0, %c0_i32_1 : i32, i32, i32
  }
  func.func @transform_6(%arg0: i32) -> (i32, i32, i32) {
    %c0_i32 = arith.constant 0 : i32
    %c0_i32_0 = arith.constant 0 : i32
    %c0_i32_1 = arith.constant 0 : i32
    %c0_i32_2 = arith.constant 0 : i32
    return %c0_i32, %c0_i32_0, %c0_i32_1 : i32, i32, i32
  }
  func.func @transform_7(%arg0: i32) -> (i32, i32) {
    %c0_i32 = arith.constant 0 : i32
    %c0_i32_0 = arith.constant 0 : i32
    %c0_i32_1 = arith.constant 0 : i32
    return %c0_i32, %c0_i32_0 : i32, i32
  }
  func.func @transform_8(%arg0: i32) -> (i32, i32, i32) {
    %c0_i32 = arith.constant 0 : i32
    %c0_i32_0 = arith.constant 0 : i32
    %c0_i32_1 = arith.constant 0 : i32
    %c0_i32_2 = arith.constant 0 : i32
    return %c0_i32, %c0_i32_0, %c0_i32_1 : i32, i32, i32
  }
  func.func @transform_9(%arg0: i32) -> (i32, i32) {
    %c0_i32 = arith.constant 0 : i32
    %c0_i32_0 = arith.constant 0 : i32
    %c0_i32_1 = arith.constant 0 : i32
    return %c0_i32, %c0_i32_0 : i32, i32
  }
  func.func @transform_10(%arg0: i32) -> (i32, i32) {
    %c0_i32 = arith.constant 0 : i32
    %c0_i32_0 = arith.constant 0 : i32
    %c0_i32_1 = arith.constant 0 : i32
    return %c0_i32, %c0_i32_0 : i32, i32
  }
  func.func @transform_11(%arg0: i32) -> (i32, i32) {
    %c0_i32 = arith.constant 0 : i32
    %c0_i32_0 = arith.constant 0 : i32
    %c0_i32_1 = arith.constant 0 : i32
    return %c0_i32, %c0_i32_0 : i32, i32
  }
  func.func @transform_12(%arg0: i32) -> (i32, i32, i32) {
    %c0_i32 = arith.constant 0 : i32
    %c0_i32_0 = arith.constant 0 : i32
    %c0_i32_1 = arith.constant 0 : i32
    %c0_i32_2 = arith.constant 0 : i32
    return %c0_i32, %c0_i32_0, %c0_i32_1 : i32, i32, i32
  }
  func.func @transform_13(%arg0: i32) -> (i32, i32, i32) {
    %c0_i32 = arith.constant 0 : i32
    %c0_i32_0 = arith.constant 0 : i32
    %c0_i32_1 = arith.constant 0 : i32
    %c0_i32_2 = arith.constant 0 : i32
    return %c0_i32, %c0_i32_0, %c0_i32_1 : i32, i32, i32
  }
  func.func @transform_14(%arg0: i32) -> (i32, i32) {
    %c0_i32 = arith.constant 0 : i32
    %c0_i32_0 = arith.constant 0 : i32
    %c0_i32_1 = arith.constant 0 : i32
    return %c0_i32, %c0_i32_0 : i32, i32
  }
  func.func @transform_15(%arg0: i32) -> (i32, i32) {
    %c0_i32 = arith.constant 0 : i32
    %c0_i32_0 = arith.constant 0 : i32
    %c0_i32_1 = arith.constant 0 : i32
    return %c0_i32, %c0_i32_0 : i32, i32
  }
  func.func @transform_16(%arg0: i32) -> (i32, i32, i32) {
    %c0_i32 = arith.constant 0 : i32
    %c0_i32_0 = arith.constant 0 : i32
    %c0_i32_1 = arith.constant 0 : i32
    return %arg0, %c0_i32, %c0_i32_0 : i32, i32, i32
  }
  func.func @transform_17(%arg0: i32) -> (i32, i32) {
    %c0_i32 = arith.constant 0 : i32
    %c0_i32_0 = arith.constant 0 : i32
    %c0_i32_1 = arith.constant 0 : i32
    return %c0_i32, %c0_i32_0 : i32, i32
  }
  func.func @transform_18(%arg0: i32) -> (i32, i32) {
    %c0_i32 = arith.constant 0 : i32
    %c0_i32_0 = arith.constant 0 : i32
    %c0_i32_1 = arith.constant 0 : i32
    return %c0_i32, %c0_i32_0 : i32, i32
  }
}

</mosaic_0001>

<llo_original>
// kernel: tpu_custom_call.1
$region0: #{tpu_custom_call.1}
  #allocation0 [shape = 'u32[]', space=smem, size = 0x4, offset = 0x4, fixed_abs, tag = 'smem constant byte address 0x4 - core index']
  #allocation1 [shape = 'u32[144,128]{1,0:T(1,128)}', space=vmem, size = 0x12000, scoped, tag = 'internal scratch']
  %s0 = inlined_call_operand.hbm [shape: f32[8,128], index: 0, kind: input, shape index: {}]
  %s1 = inlined_call_operand.hbm [shape: f32[8,128], index: 1, kind: output, shape index: {}]
  %s2 = sld [smem:[#allocation0]]
  $region18: #{tpu_custom_call.1} parent=0
    _
  %s4 = ssub.s32 1, %s2
  %s5 = scalar_select 0, %s4, %s2
  $region1: #{tpu_custom_call.1} parent=0
    #allocation2 [shape = 'u8[4096]{0}', space=vmem, size = 0x1000, scoped, tag = 'input window, operand 0, single buffered']
    #allocation3 [shape = 's32[1]{0}', space=sflag, size = 0x4, scoped, tag = 'scoped memory for tpu_custom_call.1']
    #allocation4 [shape = 's32[1]{0}', space=sflag, size = 0x4, scoped, tag = 'scoped memory for tpu_custom_call.1']
    #allocation5 [shape = 'u8[4096]{0}', space=vmem, size = 0x1000, scoped, tag = 'output window, operand 0, single buffered']
    %6 = vsyncpa [#allocation3], 0
    %7 = vsyncpa [#allocation4], 0
    // Predicated region
    $region2: #{tpu_custom_call.1} parent=1 // pred_check
      _
    $region3: #{tpu_custom_call.1} parent=1 // pred_check_branch
      %9 = sbr.rel (0) target = $region5
    $region4: #{tpu_custom_call.1} parent=1 // pred_region
      %s11 = ssub.s32 128, 128
      %12 = vsyncadd [#allocation3], %s11
      %s14 = sshll.u32 [#allocation2], 4
      %s15 = int_to_ptr.vmem [resolvable:$true] %s14
      %17 = dma.hbm_to_vmem [thread:$0]  %s0, 128, %s15, [#allocation3]
    $region5: #{tpu_custom_call.1} parent=1 // pred_fallthru
      _
    // Predicated region
    $region6: #{tpu_custom_call.1} parent=1 // pred_check
      _
    $region7: #{tpu_custom_call.1} parent=1 // pred_check_branch
      %19 = sbr.rel (0) target = $region9
    $region8: #{tpu_custom_call.1} parent=1 // pred_region
      %20 = dma.done [#allocation3], 128
    $region9: #{tpu_custom_call.1} parent=1 // pred_fallthru
      _
    %v21 = vld [vmem:[#allocation2] sm:$0xff]
    %22 = vrot.lane.b32.xlu0 %v21, 1
    %v23 = vpop.permute.xlu0 %22
    %24 = vst [vmem:[#allocation5] sm:$0xff] %v23
    // Predicated region
    $region10: #{tpu_custom_call.1} parent=1 // pred_check
      _
    $region11: #{tpu_custom_call.1} parent=1 // pred_check_branch
      %26 = sbr.rel (0) target = $region13
    $region12: #{tpu_custom_call.1} parent=1 // pred_region
      %s28 = ssub.s32 128, 128
      %29 = vsyncadd [#allocation4], %s28
      %s31 = sshll.u32 [#allocation5], 4
      %s32 = int_to_ptr.vmem [resolvable:$true] %s31
      %34 = dma.vmem_to_hbm [thread:$0]  %s32, 128, %s1, [#allocation4]
    $region13: #{tpu_custom_call.1} parent=1 // pred_fallthru
      _
    // Predicated region
    $region14: #{tpu_custom_call.1} parent=1 // pred_check
      _
    $region15: #{tpu_custom_call.1} parent=1 // pred_check_branch
      %36 = sbr.rel (0) target = $region17
    $region16: #{tpu_custom_call.1} parent=1 // pred_region
      %37 = dma.done [#allocation4], 128
    $region17: #{tpu_custom_call.1} parent=1 // pred_fallthru
      _
    %38 = vsyncpa [#allocation3], 1
    %39 = vsyncpa [#allocation4], 1

// kernel: run.1
$region0: #{run.1}
  #allocation0 [shape = 'u32[]', space=smem, size = 0x4, offset = 0x4, fixed_abs, tag = 'smem constant byte address 0x4 - core index']
  #allocation1 [shape = 'u32[144,128]{1,0:T(1,128)}', space=vmem, size = 0x12000, scoped, tag = 'internal scratch']
  %s0 = inlined_call_operand.vmem [shape: bf16[8,196,256], index: 0, kind: input, shape index: {}]
  %s1 = inlined_call_operand.vmem [shape: f32[8,256], index: 1, kind: input, shape index: {}]
  %s2 = inlined_call_operand.vmem [shape: f32[2,256], index: 2, kind: input, shape index: {}]
  %s3 = inlined_call_operand.vmem [shape: bf16[8,196], index: 3, kind: input, shape index: {}]
  %s4 = inlined_call_operand.vmem [shape: f32[8,1], index: 4, kind: input, shape index: {}]
  %s5 = inlined_call_operand.vmem [shape: f32[8,2,1], index: 5, kind: input, shape index: {}]
  %s6 = inlined_call_operand.vmem [shape: f32[2,2,1], index: 6, kind: input, shape index: {}]
  %s7 = inlined_call_operand.vmem [shape: f32[2,1], index: 7, kind: input, shape index: {}]
  %s8 = inlined_call_operand.vmem [shape: f32[2,8,1], index: 8, kind: input, shape index: {}]
  %s9 = inlined_call_operand.vmem [shape: f32[8,1], index: 9, kind: input, shape index: {}]
  %s10 = inlined_call_operand.vmem [shape: bf16[8,200], index: 10, kind: input, shape index: {}]
  %s11 = inlined_call_operand.vmem [shape: f32[8,1], index: 11, kind: input, shape index: {}]
  %s12 = inlined_call_operand.vmem [shape: f32[8,8,256], index: 12, kind: input, shape index: {}]
  %s13 = inlined_call_operand.vmem [shape: f32[8,8,256], index: 13, kind: input, shape index: {}]
  %s14 = inlined_call_operand.vmem [shape: f32[8,1], index: 14, kind: input, shape index: {}]
  %s15 = inlined_call_operand.vmem [shape: f32[8,1], index: 15, kind: input, shape index: {}]
  %s16 = inlined_call_operand.vmem [shape: f32[8,8,128], index: 16, kind: output, shape index: {0}]
  %s17 = inlined_call_operand.vmem [shape: f32[8,256], index: 17, kind: output, shape index: {1}]
  %s18 = inlined_call_operand.vmem [shape: f32[2,256], index: 18, kind: output, shape index: {2}]
  %19 = xla_tuple %s16, %s17, %s18
  %s20 = sld [smem:[#allocation0]]
  $region117: #{run.1} parent=0
    _
  %s22 = ssub.s32 1, %s20
  %s23 = scalar_select 0, %s22, %s20
  loop: start=0, step=1, limit=10
  $region2: #{run.1} parent=0 // loop_pre_header
    _
  $region3: #{run.1} parent=0 // loop_header
    %s25 = sphi 0, %s29
    %p26 = scmp.ge.s32.totalorder %s25, 10
    %s35 = sphi 0, %s37
    %s38 = sphi 0, %s35
    %s39 = sphi 0, %s38
    %s55 = sphi 0, %s39
    %s59 = sphi 0, %s59
    %s61 = sphi 0, %s59
    %s62 = sphi 0, %s61
    %s76 = sphi 0, %s62
    %s80 = sphi 0, %s80
    %s82 = sphi 0, %s80
    %s83 = sphi 0, %s82
    %s97 = sphi 0, %s83
    %s101 = sphi 0, %s101
    %s103 = sphi 0, %s101
    %s104 = sphi 0, %s103
    %s118 = sphi 0, %s104
    %s122 = sphi 0, %s122
    %s124 = sphi 0, %s122
    %s125 = sphi 0, %s124
    %s139 = sphi 0, %s125
    %s143 = sphi 0, %s143
    %s145 = sphi 0, %s143
    %s146 = sphi 0, %s145
    %s160 = sphi 0, %s146
    %s164 = sphi 0, %s164
    %s166 = sphi 0, %s164
    %s167 = sphi 0, %s166
    %s181 = sphi 0, %s167
    %s185 = sphi 0, %s185
    %s187 = sphi 0, %s185
    %s188 = sphi 0, %s187
    %s202 = sphi 0, %s188
    %s206 = sphi 0, %s206
    %s208 = sphi 0, %s206
    %s209 = sphi 0, %s208
    %s223 = sphi 0, %s209
    %s227 = sphi 0, %s227
    %s229 = sphi 0, %s227
    %s230 = sphi 0, %s229
    %s244 = sphi 0, %s230
    %s248 = sphi 0, %s248
    %s250 = sphi 0, %s248
    %s251 = sphi 0, %s250
    %s265 = sphi 0, %s251
    %s269 = sphi 0, %s269
    %s271 = sphi 0, %s269
    %s272 = sphi 0, %s271
    %s286 = sphi 0, %s272
    %s290 = sphi 0, %s290
    %s292 = sphi 0, %s290
    %s293 = sphi 0, %s292
    %s307 = sphi 0, %s293
    %s311 = sphi 0, %s311
    %s313 = sphi 0, %s311
    %s314 = sphi 0, %s313
    %s328 = sphi 0, %s314
    %s332 = sphi 0, %s332
    %s334 = sphi 0, %s332
    %s335 = sphi 0, %s334
    %s349 = sphi 0, %s335
    %s353 = sphi 0, %s353
    %s355 = sphi 0, %s353
    %s356 = sphi 0, %s355
    %s370 = sphi 0, %s356
    %s376 = sphi 0, %s378
    %s379 = sphi 0, %s376
    %s380 = sphi 0, %s379
    %s396 = sphi 0, %s380
    %s400 = sphi 0, %s400
    %s402 = sphi 0, %s400
    %s403 = sphi 0, %s402
    %s417 = sphi 0, %s403
    %s421 = sphi 0, %s421
    %s423 = sphi 0, %s421
    %s424 = sphi 0, %s423
    %s438 = sphi 0, %s424
  $region4: #{run.1} parent=0 // loop_header_branch
    %28 = sbr.rel (%p26) target = $region8
  $region5: #{run.1} parent=0 // loop_body
    %s30 = ssub.s32 %s25, 1
    %s31 = ssub.s32 %s25, 2
    %s32 = sadd.s32 %s25, 1
    %s33 = ssub.s32 %s25, %s32
    %p34 = scmp.eq.s32.totalorder %s33, 0
    %s36 = sadd.s32 %s35, 1
    %s37 = scalar_select %p34, %s35, %s36
    %p40 = pneg %p34
    %p41 = scmp.eq.s32.totalorder %s25, 7
    %p42 = por %p40, %p41
    %p43 = scmp.ne.s32.totalorder %s35, %s38
    %p44 = scmp.eq.s32.totalorder %s25, 0
    %p45 = por %p43, %p44
    %p46 = scmp.ne.s32.totalorder %s35, %s38
    %p47 = scmp.eq.s32.totalorder %s30, 7
    %p48 = por %p46, %p47
    %p49 = scmp.ne.s32.totalorder %s38, %s39
    %p50 = scmp.eq.s32.totalorder %s30, 0
    %p51 = por %p49, %p50
    %p52 = scmp.ne.s32.totalorder %s38, %s39
    %p53 = scmp.eq.s32.totalorder %s31, 7
    %p54 = por %p52, %p53
    %p56 = scmp.ne.s32.totalorder %s39, %s55
    %p57 = scmp.eq.s32.totalorder %s31, 0
    %p58 = por %p56, %p57
    %s60 = sadd.s32 %s59, 1
    %p63 = scmp.eq.s32.totalorder %s25, 7
    %p64 = scmp.ne.s32.totalorder %s59, %s61
    %p65 = scmp.eq.s32.totalorder %s25, 0
    %p66 = por %p64, %p65
    %p67 = scmp.ne.s32.totalorder %s59, %s61
    %p68 = scmp.eq.s32.totalorder %s30, 7
    %p69 = por %p67, %p68
    %p70 = scmp.ne.s32.totalorder %s61, %s62
    %p71 = scmp.eq.s32.totalorder %s30, 0
    %p72 = por %p70, %p71
    %p73 = scmp.ne.s32.totalorder %s61, %s62
    %p74 = scmp.eq.s32.totalorder %s31, 7
    %p75 = por %p73, %p74
    %p77 = scmp.ne.s32.totalorder %s62, %s76
    %p78 = scmp.eq.s32.totalorder %s31, 0
    %p79 = por %p77, %p78
    %s81 = sadd.s32 %s80, 1
    %p84 = scmp.eq.s32.totalorder %s25, 7
    %p85 = scmp.ne.s32.totalorder %s80, %s82
    %p86 = scmp.eq.s32.totalorder %s25, 0
    %p87 = por %p85, %p86
    %p88 = scmp.ne.s32.totalorder %s80, %s82
    %p89 = scmp.eq.s32.totalorder %s30, 7
    %p90 = por %p88, %p89
    %p91 = scmp.ne.s32.totalorder %s82, %s83
    %p92 = scmp.eq.s32.totalorder %s30, 0
    %p93 = por %p91, %p92
    %p94 = scmp.ne.s32.totalorder %s82, %s83
    %p95 = scmp.eq.s32.totalorder %s31, 7
    %p96 = por %p94, %p95
    %p98 = scmp.ne.s32.totalorder %s83, %s97
    %p99 = scmp.eq.s32.totalorder %s31, 0
    %p100 = por %p98, %p99
    %s102 = sadd.s32 %s101, 1
    %p105 = scmp.eq.s32.totalorder %s25, 7
    %p106 = scmp.ne.s32.totalorder %s101, %s103
    %p107 = scmp.eq.s32.totalorder %s25, 0
    %p108 = por %p106, %p107
    %p109 = scmp.ne.s32.totalorder %s101, %s103
    %p110 = scmp.eq.s32.totalorder %s30, 7
    %p111 = por %p109, %p110
    %p112 = scmp.ne.s32.totalorder %s103, %s104
    %p113 = scmp.eq.s32.totalorder %s30, 0
    %p114 = por %p112, %p113
    %p115 = scmp.ne.s32.totalorder %s103, %s104
    %p116 = scmp.eq.s32.totalorder %s31, 7
    %p117 = por %p115, %p116
    %p119 = scmp.ne.s32.totalorder %s104, %s118
    %p120 = scmp.eq.s32.totalorder %s31, 0
    %p121 = por %p119, %p120
    %s123 = sadd.s32 %s122, 1
    %p126 = scmp.eq.s32.totalorder %s25, 7
    %p127 = scmp.ne.s32.totalorder %s122, %s124
    %p128 = scmp.eq.s32.totalorder %s25, 0
    %p129 = por %p127, %p128
    %p130 = scmp.ne.s32.totalorder %s122, %s124
    %p131 = scmp.eq.s32.totalorder %s30, 7
    %p132 = por %p130, %p131
    %p133 = scmp.ne.s32.totalorder %s124, %s125
    %p134 = scmp.eq.s32.totalorder %s30, 0
    %p135 = por %p133, %p134
    %p136 = scmp.ne.s32.totalorder %s124, %s125
    %p137 = scmp.eq.s32.totalorder %s31, 7
    %p138 = por %p136, %p137
    %p140 = scmp.ne.s32.totalorder %s125, %s139
    %p141 = scmp.eq.s32.totalorder %s31, 0
    %p142 = por %p140, %p141
    %s144 = sadd.s32 %s143, 1
    %p147 = scmp.eq.s32.totalorder %s25, 7
    %p148 = scmp.ne.s32.totalorder %s143, %s145
    %p149 = scmp.eq.s32.totalorder %s25, 0
    %p150 = por %p148, %p149
    %p151 = scmp.ne.s32.totalorder %s143, %s145
    %p152 = scmp.eq.s32.totalorder %s30, 7
    %p153 = por %p151, %p152
    %p154 = scmp.ne.s32.totalorder %s145, %s146
    %p155 = scmp.eq.s32.totalorder %s30, 0
    %p156 = por %p154, %p155
    %p157 = scmp.ne.s32.totalorder %s145, %s146
    %p158 = scmp.eq.s32.totalorder %s31, 7
    %p159 = por %p157, %p158
    %p161 = scmp.ne.s32.totalorder %s146, %s160
    %p162 = scmp.eq.s32.totalorder %s31, 0
    %p163 = por %p161, %p162
    %s165 = sadd.s32 %s164, 1
    %p168 = scmp.eq.s32.totalorder %s25, 7
    %p169 = scmp.ne.s32.totalorder %s164, %s166
    %p170 = scmp.eq.s32.totalorder %s25, 0
    %p171 = por %p169, %p170
    %p172 = scmp.ne.s32.totalorder %s164, %s166
    %p173 = scmp.eq.s32.totalorder %s30, 7
    %p174 = por %p172, %p173
    %p175 = scmp.ne.s32.totalorder %s166, %s167
    %p176 = scmp.eq.s32.totalorder %s30, 0
    %p177 = por %p175, %p176
    %p178 = scmp.ne.s32.totalorder %s166, %s167
    %p179 = scmp.eq.s32.totalorder %s31, 7
    %p180 = por %p178, %p179
    %p182 = scmp.ne.s32.totalorder %s167, %s181
    %p183 = scmp.eq.s32.totalorder %s31, 0
    %p184 = por %p182, %p183
    %s186 = sadd.s32 %s185, 1
    %p189 = scmp.eq.s32.totalorder %s25, 7
    %p190 = scmp.ne.s32.totalorder %s185, %s187
    %p191 = scmp.eq.s32.totalorder %s25, 0
    %p192 = por %p190, %p191
    %p193 = scmp.ne.s32.totalorder %s185, %s187
    %p194 = scmp.eq.s32.totalorder %s30, 7
    %p195 = por %p193, %p194
    %p196 = scmp.ne.s32.totalorder %s187, %s188
    %p197 = scmp.eq.s32.totalorder %s30, 0
    %p198 = por %p196, %p197
    %p199 = scmp.ne.s32.totalorder %s187, %s188
    %p200 = scmp.eq.s32.totalorder %s31, 7
    %p201 = por %p199, %p200
    %p203 = scmp.ne.s32.totalorder %s188, %s202
    %p204 = scmp.eq.s32.totalorder %s31, 0
    %p205 = por %p203, %p204
    %s207 = sadd.s32 %s206, 1
    %p210 = scmp.eq.s32.totalorder %s25, 7
    %p211 = scmp.ne.s32.totalorder %s206, %s208
    %p212 = scmp.eq.s32.totalorder %s25, 0
    %p213 = por %p211, %p212
    %p214 = scmp.ne.s32.totalorder %s206, %s208
    %p215 = scmp.eq.s32.totalorder %s30, 7
    %p216 = por %p214, %p215
    %p217 = scmp.ne.s32.totalorder %s208, %s209
    %p218 = scmp.eq.s32.totalorder %s30, 0
    %p219 = por %p217, %p218
    %p220 = scmp.ne.s32.totalorder %s208, %s209
    %p221 = scmp.eq.s32.totalorder %s31, 7
    %p222 = por %p220, %p221
    %p224 = scmp.ne.s32.totalorder %s209, %s223
    %p225 = scmp.eq.s32.totalorder %s31, 0
    %p226 = por %p224, %p225
    %s228 = sadd.s32 %s227, 1
    %p231 = scmp.eq.s32.totalorder %s25, 7
    %p232 = scmp.ne.s32.totalorder %s227, %s229
    %p233 = scmp.eq.s32.totalorder %s25, 0
    %p234 = por %p232, %p233
    %p235 = scmp.ne.s32.totalorder %s227, %s229
    %p236 = scmp.eq.s32.totalorder %s30, 7
    %p237 = por %p235, %p236
    %p238 = scmp.ne.s32.totalorder %s229, %s230
    %p239 = scmp.eq.s32.totalorder %s30, 0
    %p240 = por %p238, %p239
    %p241 = scmp.ne.s32.totalorder %s229, %s230
    %p242 = scmp.eq.s32.totalorder %s31, 7
    %p243 = por %p241, %p242
    %p245 = scmp.ne.s32.totalorder %s230, %s244
    %p246 = scmp.eq.s32.totalorder %s31, 0
    %p247 = por %p245, %p246
    %s249 = sadd.s32 %s248, 1
    %p252 = scmp.eq.s32.totalorder %s25, 7
    %p253 = scmp.ne.s32.totalorder %s248, %s250
    %p254 = scmp.eq.s32.totalorder %s25, 0
    %p255 = por %p253, %p254
    %p256 = scmp.ne.s32.totalorder %s248, %s250
    %p257 = scmp.eq.s32.totalorder %s30, 7
    %p258 = por %p256, %p257
    %p259 = scmp.ne.s32.totalorder %s250, %s251
    %p260 = scmp.eq.s32.totalorder %s30, 0
    %p261 = por %p259, %p260
    %p262 = scmp.ne.s32.totalorder %s250, %s251
    %p263 = scmp.eq.s32.totalorder %s31, 7
    %p264 = por %p262, %p263
    %p266 = scmp.ne.s32.totalorder %s251, %s265
    %p267 = scmp.eq.s32.totalorder %s31, 0
    %p268 = por %p266, %p267
    %s270 = sadd.s32 %s269, 1
    %p273 = scmp.eq.s32.totalorder %s25, 7
    %p274 = scmp.ne.s32.totalorder %s269, %s271
    %p275 = scmp.eq.s32.totalorder %s25, 0
    %p276 = por %p274, %p275
    %p277 = scmp.ne.s32.totalorder %s269, %s271
    %p278 = scmp.eq.s32.totalorder %s30, 7
    %p279 = por %p277, %p278
    %p280 = scmp.ne.s32.totalorder %s271, %s272
    %p281 = scmp.eq.s32.totalorder %s30, 0
    %p282 = por %p280, %p281
    %p283 = scmp.ne.s32.totalorder %s271, %s272
    %p284 = scmp.eq.s32.totalorder %s31, 7
    %p285 = por %p283, %p284
    %p287 = scmp.ne.s32.totalorder %s272, %s286
    %p288 = scmp.eq.s32.totalorder %s31, 0
    %p289 = por %p287, %p288
    %s291 = sadd.s32 %s290, 1
    %p294 = scmp.eq.s32.totalorder %s25, 7
    %p295 = scmp.ne.s32.totalorder %s290, %s292
    %p296 = scmp.eq.s32.totalorder %s25, 0
    %p297 = por %p295, %p296
    %p298 = scmp.ne.s32.totalorder %s290, %s292
    %p299 = scmp.eq.s32.totalorder %s30, 7
    %p300 = por %p298, %p299
    %p301 = scmp.ne.s32.totalorder %s292, %s293
    %p302 = scmp.eq.s32.totalorder %s30, 0
    %p303 = por %p301, %p302
    %p304 = scmp.ne.s32.totalorder %s292, %s293
    %p305 = scmp.eq.s32.totalorder %s31, 7
    %p306 = por %p304, %p305
    %p308 = scmp.ne.s32.totalorder %s293, %s307
    %p309 = scmp.eq.s32.totalorder %s31, 0
    %p310 = por %p308, %p309
    %s312 = sadd.s32 %s311, 1
    %p315 = scmp.eq.s32.totalorder %s25, 7
    %p316 = scmp.ne.s32.totalorder %s311, %s313
    %p317 = scmp.eq.s32.totalorder %s25, 0
    %p318 = por %p316, %p317
    %p319 = scmp.ne.s32.totalorder %s311, %s313
    %p320 = scmp.eq.s32.totalorder %s30, 7
    %p321 = por %p319, %p320
    %p322 = scmp.ne.s32.totalorder %s313, %s314
    %p323 = scmp.eq.s32.totalorder %s30, 0
    %p324 = por %p322, %p323
    %p325 = scmp.ne.s32.totalorder %s313, %s314
    %p326 = scmp.eq.s32.totalorder %s31, 7
    %p327 = por %p325, %p326
    %p329 = scmp.ne.s32.totalorder %s314, %s328
    %p330 = scmp.eq.s32.totalorder %s31, 0
    %p331 = por %p329, %p330
    %s333 = sadd.s32 %s332, 1
    %p336 = scmp.eq.s32.totalorder %s25, 7
    %p337 = scmp.ne.s32.totalorder %s332, %s334
    %p338 = scmp.eq.s32.totalorder %s25, 0
    %p339 = por %p337, %p338
    %p340 = scmp.ne.s32.totalorder %s332, %s334
    %p341 = scmp.eq.s32.totalorder %s30, 7
    %p342 = por %p340, %p341
    %p343 = scmp.ne.s32.totalorder %s334, %s335
    %p344 = scmp.eq.s32.totalorder %s30, 0
    %p345 = por %p343, %p344
    %p346 = scmp.ne.s32.totalorder %s334, %s335
    %p347 = scmp.eq.s32.totalorder %s31, 7
    %p348 = por %p346, %p347
    %p350 = scmp.ne.s32.totalorder %s335, %s349
    %p351 = scmp.eq.s32.totalorder %s31, 0
    %p352 = por %p350, %p351
    %s354 = sadd.s32 %s353, 1
    %p357 = scmp.eq.s32.totalorder %s25, 7
    %p358 = scmp.ne.s32.totalorder %s353, %s355
    %p359 = scmp.eq.s32.totalorder %s25, 0
    %p360 = por %p358, %p359
    %p361 = scmp.ne.s32.totalorder %s353, %s355
    %p362 = scmp.eq.s32.totalorder %s30, 7
    %p363 = por %p361, %p362
    %p364 = scmp.ne.s32.totalorder %s355, %s356
    %p365 = scmp.eq.s32.totalorder %s30, 0
    %p366 = por %p364, %p365
    %p367 = scmp.ne.s32.totalorder %s355, %s356
    %p368 = scmp.eq.s32.totalorder %s31, 7
    %p369 = por %p367, %p368
    %p371 = scmp.ne.s32.totalorder %s356, %s370
    %p372 = scmp.eq.s32.totalorder %s31, 0
    %p373 = por %p371, %p372
    %s374 = ssub.s32 %s25, %s32
    %p375 = scmp.eq.s32.totalorder %s374, 0
    %s377 = sadd.s32 %s376, 1
    %s378 = scalar_select %p375, %s376, %s377
    %p381 = pneg %p375
    %p382 = scmp.eq.s32.totalorder %s25, 7
    %p383 = por %p381, %p382
    %p384 = scmp.ne.s32.totalorder %s376, %s379
    %p385 = scmp.eq.s32.totalorder %s25, 0
    %p386 = por %p384, %p385
    %p387 = scmp.ne.s32.totalorder %s376, %s379
    %p388 = scmp.eq.s32.totalorder %s30, 7
    %p389 = por %p387, %p388
    %p390 = scmp.ne.s32.totalorder %s379, %s380
    %p391 = scmp.eq.s32.totalorder %s30, 0
    %p392 = por %p390, %p391
    %p393 = scmp.ne.s32.totalorder %s379, %s380
    %p394 = scmp.eq.s32.totalorder %s31, 7
    %p395 = por %p393, %p394
    %p397 = scmp.ne.s32.totalorder %s380, %s396
    %p398 = scmp.eq.s32.totalorder %s31, 0
    %p399 = por %p397, %p398
    %s401 = sadd.s32 %s400, 1
    %p404 = scmp.eq.s32.totalorder %s25, 7
    %p405 = scmp.ne.s32.totalorder %s400, %s402
    %p406 = scmp.eq.s32.totalorder %s25, 0
    %p407 = por %p405, %p406
    %p408 = scmp.ne.s32.totalorder %s400, %s402
    %p409 = scmp.eq.s32.totalorder %s30, 7
    %p410 = por %p408, %p409
    %p411 = scmp.ne.s32.totalorder %s402, %s403
    %p412 = scmp.eq.s32.totalorder %s30, 0
    %p413 = por %p411, %p412
    %p414 = scmp.ne.s32.totalorder %s402, %s403
    %p415 = scmp.eq.s32.totalorder %s31, 7
    %p416 = por %p414, %p415
    %p418 = scmp.ne.s32.totalorder %s403, %s417
    %p419 = scmp.eq.s32.totalorder %s31, 0
    %p420 = por %p418, %p419
    %s422 = sadd.s32 %s421, 1
    %p425 = scmp.eq.s32.totalorder %s25, 7
    %p426 = scmp.ne.s32.totalorder %s421, %s423
    %p427 = scmp.eq.s32.totalorder %s25, 0
    %p428 = por %p426, %p427
    %p429 = scmp.ne.s32.totalorder %s421, %s423
    %p430 = scmp.eq.s32.totalorder %s30, 7
    %p431 = por %p429, %p430
    %p432 = scmp.ne.s32.totalorder %s423, %s424
    %p433 = scmp.eq.s32.totalorder %s30, 0
    %p434 = por %p432, %p433
    %p435 = scmp.ne.s32.totalorder %s423, %s424
    %p436 = scmp.eq.s32.totalorder %s31, 7
    %p437 = por %p435, %p436
    %p439 = scmp.ne.s32.totalorder %s424, %s438
    %p440 = scmp.eq.s32.totalorder %s31, 0
    %p441 = por %p439, %p440
    %p442 = scmp.le.s32.totalorder 1, %s25
    %p443 = scmp.lt.s32.totalorder %s25, 9
    %p444 = pnand %p442, %p443
    %p445 = pneg %p444
    // Predicated region
    $region9: #{run.1} parent=5 // pred_check
      _
    $region10: #{run.1} parent=5 // pred_check_branch
      %447 = sbr.rel (%p444) target = $region12
    $region11: #{run.1} parent=5 // pred_region
      %s448 = ssub.s32 %s25, 1
      // Predicated region
      $region13: #{run.1} parent=11 // pred_check
        %p449 = pneg %p72
      $region14: #{run.1} parent=11 // pred_check_branch
        %451 = sbr.rel (%p449) target = $region16
      $region15: #{run.1} parent=11 // pred_region
        _
      $region16: #{run.1} parent=11 // pred_fallthru
        _
      // Predicated region
      $region17: #{run.1} parent=11 // pred_check
        %p452 = pneg %p93
      $region18: #{run.1} parent=11 // pred_check_branch
        %454 = sbr.rel (%p452) target = $region20
      $region19: #{run.1} parent=11 // pred_region
        _
      $region20: #{run.1} parent=11 // pred_fallthru
        _
      // Predicated region
      $region21: #{run.1} parent=11 // pred_check
        %p455 = pneg %p114
      $region22: #{run.1} parent=11 // pred_check_branch
        %457 = sbr.rel (%p455) target = $region24
      $region23: #{run.1} parent=11 // pred_region
        _
      $region24: #{run.1} parent=11 // pred_fallthru
        _
      // Predicated region
      $region25: #{run.1} parent=11 // pred_check
        %p458 = pneg %p135
      $region26: #{run.1} parent=11 // pred_check_branch
        %460 = sbr.rel (%p458) target = $region28
      $region27: #{run.1} parent=11 // pred_region
        _
      $region28: #{run.1} parent=11 // pred_fallthru
        _
      // Predicated region
      $region29: #{run.1} parent=11 // pred_check
        %p461 = pneg %p156
      $region30: #{run.1} parent=11 // pred_check_branch
        %463 = sbr.rel (%p461) target = $region32
      $region31: #{run.1} parent=11 // pred_region
        _
      $region32: #{run.1} parent=11 // pred_fallthru
        _
      // Predicated region
      $region33: #{run.1} parent=11 // pred_check
        %p464 = pneg %p177
      $region34: #{run.1} parent=11 // pred_check_branch
        %466 = sbr.rel (%p464) target = $region36
      $region35: #{run.1} parent=11 // pred_region
        _
      $region36: #{run.1} parent=11 // pred_fallthru
        _
      // Predicated region
      $region37: #{run.1} parent=11 // pred_check
        %p467 = pneg %p198
      $region38: #{run.1} parent=11 // pred_check_branch
        %469 = sbr.rel (%p467) target = $region40
      $region39: #{run.1} parent=11 // pred_region
        _
      $region40: #{run.1} parent=11 // pred_fallthru
        _
      // Predicated region
      $region41: #{run.1} parent=11 // pred_check
        %p470 = pneg %p219
      $region42: #{run.1} parent=11 // pred_check_branch
        %472 = sbr.rel (%p470) target = $region44
      $region43: #{run.1} parent=11 // pred_region
        _
      $region44: #{run.1} parent=11 // pred_fallthru
        _
      // Predicated region
      $region45: #{run.1} parent=11 // pred_check
        %p473 = pneg %p240
      $region46: #{run.1} parent=11 // pred_check_branch
        %475 = sbr.rel (%p473) target = $region48
      $region47: #{run.1} parent=11 // pred_region
        _
      $region48: #{run.1} parent=11 // pred_fallthru
        _
      // Predicated region
      $region49: #{run.1} parent=11 // pred_check
        %p476 = pneg %p261
      $region50: #{run.1} parent=11 // pred_check_branch
        %478 = sbr.rel (%p476) target = $region52
      $region51: #{run.1} parent=11 // pred_region
        _
      $region52: #{run.1} parent=11 // pred_fallthru
        _
      // Predicated region
      $region53: #{run.1} parent=11 // pred_check
        %p479 = pneg %p282
      $region54: #{run.1} parent=11 // pred_check_branch
        %481 = sbr.rel (%p479) target = $region56
      $region55: #{run.1} parent=11 // pred_region
        _
      $region56: #{run.1} parent=11 // pred_fallthru
        _
      // Predicated region
      $region57: #{run.1} parent=11 // pred_check
        %p482 = pneg %p303
      $region58: #{run.1} parent=11 // pred_check_branch
        %484 = sbr.rel (%p482) target = $region60
      $region59: #{run.1} parent=11 // pred_region
        _
      $region60: #{run.1} parent=11 // pred_fallthru
        _
      // Predicated region
      $region61: #{run.1} parent=11 // pred_check
        %p485 = pneg %p324
      $region62: #{run.1} parent=11 // pred_check_branch
        %487 = sbr.rel (%p485) target = $region64
      $region63: #{run.1} parent=11 // pred_region
        _
      $region64: #{run.1} parent=11 // pred_fallthru
        _
      // Predicated region
      $region65: #{run.1} parent=11 // pred_check
        %p488 = pneg %p345
      $region66: #{run.1} parent=11 // pred_check_branch
        %490 = sbr.rel (%p488) target = $region68
      $region67: #{run.1} parent=11 // pred_region
        _
      $region68: #{run.1} parent=11 // pred_fallthru
        _
      // Predicated region
      $region69: #{run.1} parent=11 // pred_check
        %p491 = pneg %p366
      $region70: #{run.1} parent=11 // pred_check_branch
        %493 = sbr.rel (%p491) target = $region72
      $region71: #{run.1} parent=11 // pred_region
        _
      $region72: #{run.1} parent=11 // pred_fallthru
        _
    $region12: #{run.1} parent=5 // pred_fallthru
      _
    %p494 = scmp.lt.s32.totalorder %s25, 8
    // Predicated region
    $region73: #{run.1} parent=5 // pred_check
      %p495 = pneg %p494
    $region74: #{run.1} parent=5 // pred_check_branch
      %497 = sbr.rel (%p495) target = $region76
    $region75: #{run.1} parent=5 // pred_region
      // Predicated region
      $region77: #{run.1} parent=75 // pred_check
        %p498 = pneg %p45
      $region78: #{run.1} parent=75 // pred_check_branch
        %500 = sbr.rel (%p498) target = $region80
      $region79: #{run.1} parent=75 // pred_region
        %p501 = scmp.lt.s32.totalorder %s25, 7
        %s502 = scalar_select %p501, %s25, 7
        %s503 = smul.addr %s502, 50
        %s504 = smul.addr %s503, 4
        %s505 = scalar_lea.vmem %s0, %s504
      $region80: #{run.1} parent=75 // pred_fallthru
        _
    $region76: #{run.1} parent=5 // pred_fallthru
      _
    %p506 = scmp.le.s32.totalorder 1, %s25
    %p507 = scmp.lt.s32.totalorder %s25, 9
    %p508 = pnand %p506, %p507
    %p509 = pneg %p508
    // Predicated region
    $region81: #{run.1} parent=5 // pred_check
      _
    $region82: #{run.1} parent=5 // pred_check_branch
      %511 = sbr.rel (%p508) target = $region84
    $region83: #{run.1} parent=5 // pred_region
      %s512 = ssub.s32 %s25, 1
      %p513 = scmp.lt.s32.totalorder %s30, 7
      %s514 = scalar_select %p513, %s30, 7
      %s515 = smul.addr %s514, 50
      %s516 = smul.addr %s515, 4
      %s517 = scalar_lea.vmem %s0, %s516
      %p518 = pneg %p51
      %p519 = pneg %p48
      %p520 = pneg %p72
      %p521 = pneg %p69
      %p522 = pneg %p93
      %p523 = pneg %p90
      %p524 = pneg %p114
      %p525 = pneg %p111
      %p526 = pneg %p135
      %p527 = pneg %p132
      %p528 = pneg %p156
      %p529 = pneg %p153
      %p530 = pneg %p177
      %p531 = pneg %p174
      %p532 = pneg %p198
      %p533 = pneg %p195
      %p534 = pneg %p219
      %p535 = pneg %p216
      %p536 = pneg %p240
      %p537 = pneg %p237
      %p538 = pneg %p261
      %p539 = pneg %p258
      %p540 = pneg %p282
      %p541 = pneg %p279
      %p542 = pneg %p303
      %p543 = pneg %p300
      %p544 = pneg %p324
      %p545 = pneg %p321
      %p546 = pneg %p345
      %p547 = pneg %p342
      %p548 = pneg %p366
      %p549 = pneg %p363
      %p550 = pneg %p392
      %p551 = pneg %p389
      %p552 = scmp.lt.s32.totalorder %s30, 7
      %s553 = scalar_select %p552, %s30, 7
      %s554 = smul.addr %s553, 8
      %s555 = scalar_lea.vmem %s16, %s554
      %p556 = pneg %p413
      %p557 = pneg %p410
      %p558 = pneg %p434
      %p559 = pneg %p431
      %p560 = scmp.lt.s32.totalorder %s30, 7
      %s561 = scalar_select %p560, %s30, 7
      %s562 = smul.addr %s561, 50
      %s563 = smul.addr %s562, 4
      %s564 = scalar_lea.vmem %s0, %s563
      %p565 = scmp.lt.s32.totalorder %s30, 7
      %s566 = scalar_select %p565, %s30, 7
      %s567 = smul.addr %s566, 8
      %s568 = scalar_lea.vmem %s16, %s567
      %p570 = scmp.eq.s32.totalorder %s30, 0
      // Predicated region
      $region85: #{run.1} parent=83 // pred_check
        %p571 = pneg %p570
      $region86: #{run.1} parent=83 // pred_check_branch
        %573 = sbr.rel (%p571) target = $region88
      $region87: #{run.1} parent=83 // pred_region
        %v574 = vld [vmem:[%s1] sm:$0xff]
        %v575 = vld [vmem:[%s1 + $0x8] sm:$0xff]
        %576 = vst [vmem:[%s17] sm:$0xff] %v574
        %577 = vst [vmem:[%s17 + $0x8] sm:$0xff] %v575
        %v578 = vld [vmem:[%s2] sm:$0xf]
        %579 = vst [vmem:[%s18] sm:$0xf] %v578
      $region88: #{run.1} parent=83 // pred_fallthru
        _
      %v580 = vlaneseq
      %v581 = vand.u32 %v580, 127
      %v582 = vadd.s32 %v581, 128
      %vm583 = vcmp.lt.s32.totalorder %v581, 100
      %vm584 = vcmp.lt.s32.totalorder %v582, 100
      %vm585 = vcmp.ge.s32.totalorder %v581, 128
      %vm586 = vcmp.ge.s32.totalorder %v582, 128
      %vm587 = vcmp.lt.s32.totalorder %v581, 228
      %vm588 = vcmp.lt.s32.totalorder %v582, 228
      %vm589 = vmand %vm585, %vm587
      %vm590 = vmand %vm586, %vm588
      %vm591 = vmor %vm583, %vm589
      %vm592 = vmor %vm584, %vm590
      %v593 = vld [vmem:[%s3] sm:$0xff]
      %v594 = vld [vmem:[%s564] sm:$0xff]
      %v595 = vld [vmem:[%s564 + $0x8] sm:$0xff]
      %v596 = vld [vmem:[%s564 + $0x10] sm:$0xff]
      %v597 = vld [vmem:[%s564 + $0x18] sm:$0xff]
      %v598 = vld [vmem:[%s564 + $0x20] sm:$0xff]
      %v599 = vld [vmem:[%s564 + $0x28] sm:$0xff]
      %v600 = vld [vmem:[%s564 + $0x30] sm:$0xff]
      %v601 = vld [vmem:[%s564 + $0x38] sm:$0xff]
      %v602 = vld [vmem:[%s564 + $0x40] sm:$0xff]
      %v603 = vld [vmem:[%s564 + $0x48] sm:$0xff]
      %v604 = vld [vmem:[%s564 + $0x50] sm:$0xff]
      %v605 = vld [vmem:[%s564 + $0x58] sm:$0xff]
      %v606 = vld [vmem:[%s564 + $0x60] sm:$0xff]
      %v607 = vld [vmem:[%s564 + $0x68] sm:$0xff]
      %v608 = vld [vmem:[%s564 + $0x70] sm:$0xff]
      %v609 = vld [vmem:[%s564 + $0x78] sm:$0xff]
      %v610 = vld [vmem:[%s564 + $0x80] sm:$0xff]
      %v611 = vld [vmem:[%s564 + $0x88] sm:$0xff]
      %v612 = vld [vmem:[%s564 + $0x90] sm:$0xff]
      %v613 = vld [vmem:[%s564 + $0x98] sm:$0xff]
      %v614 = vld [vmem:[%s564 + $0xa0] sm:$0xff]
      %v615 = vld [vmem:[%s564 + $0xa8] sm:$0xff]
      %v616 = vld [vmem:[%s564 + $0xb0] sm:$0xff]
      %v617 = vld [vmem:[%s564 + $0xb8] sm:$0xff]
      %v618 = vld [vmem:[%s564 + $0xc0] sm:$0x33]
      %v619 = vld [vmem:[%s4] sm:$0xff]
      %621 = vset.pattern.permute.xlu0 0
      %622 = vperm.xlu0 %621, %v619
      %v623 = vpop.permute.xlu0 %622
      %v626 = vunpack.c.l.b16 %v593
      %v627 = vunpack.c.h.b16 %v593
      %v628 = vpack.c.b16 %v626, %v626
      %v629 = vpack.c.b16 %v627, %v627
      %v656 = vunpack.c.l.b16 %v594
      %v657 = vunpack.c.h.b16 %v594
      %v658 = vunpack.c.l.b16 %v595
      %v659 = vunpack.c.h.b16 %v595
      %v660 = vunpack.c.l.b16 %v596
      %v661 = vunpack.c.h.b16 %v596
      %v662 = vunpack.c.l.b16 %v597
      %v663 = vunpack.c.h.b16 %v597
      %v664 = vunpack.c.l.b16 %v598
      %v665 = vunpack.c.h.b16 %v598
      %v666 = vunpack.c.l.b16 %v599
      %v667 = vunpack.c.h.b16 %v599
      %v668 = vunpack.c.l.b16 %v600
      %v669 = vunpack.c.h.b16 %v600
      %v670 = vunpack.c.l.b16 %v601
      %v671 = vunpack.c.h.b16 %v601
      %v672 = vunpack.c.l.b16 %v602
      %v673 = vunpack.c.h.b16 %v602
      %v674 = vunpack.c.l.b16 %v603
      %v675 = vunpack.c.h.b16 %v603
      %v676 = vunpack.c.l.b16 %v604
      %v677 = vunpack.c.h.b16 %v604
      %v678 = vunpack.c.l.b16 %v605
      %v679 = vunpack.c.h.b16 %v605
      %v680 = vunpack.c.l.b16 %v606
      %v681 = vunpack.c.h.b16 %v606
      %v682 = vunpack.c.l.b16 %v607
      %v683 = vunpack.c.h.b16 %v607
      %v684 = vunpack.c.l.b16 %v608
      %v685 = vunpack.c.h.b16 %v608
      %v686 = vunpack.c.l.b16 %v609
      %v687 = vunpack.c.h.b16 %v609
      %v688 = vunpack.c.l.b16 %v610
      %v689 = vunpack.c.h.b16 %v610
      %v690 = vunpack.c.l.b16 %v611
      %v691 = vunpack.c.h.b16 %v611
      %v692 = vunpack.c.l.b16 %v612
      %v693 = vunpack.c.h.b16 %v612
      %v694 = vunpack.c.l.b16 %v613
      %v695 = vunpack.c.h.b16 %v613
      %v696 = vunpack.c.l.b16 %v614
      %v697 = vunpack.c.h.b16 %v614
      %v698 = vunpack.c.l.b16 %v615
      %v699 = vunpack.c.h.b16 %v615
      %v700 = vunpack.c.l.b16 %v616
      %v701 = vunpack.c.h.b16 %v616
      %v702 = vunpack.c.l.b16 %v617
      %v703 = vunpack.c.h.b16 %v617
      %v704 = vunpack.c.l.b16 %v618
      %v705 = vunpack.c.h.b16 %v618
      %v706 = vpack.c.b16 %v658, %v656
      %v707 = vpack.c.b16 %v659, %v657
      %v708 = vpack.c.b16 %v662, %v660
      %v709 = vpack.c.b16 %v663, %v661
      %v710 = vpack.c.b16 %v666, %v664
      %v711 = vpack.c.b16 %v667, %v665
      %v712 = vpack.c.b16 %v670, %v668
      %v713 = vpack.c.b16 %v671, %v669
      %v714 = vpack.c.b16 %v674, %v672
      %v715 = vpack.c.b16 %v675, %v673
      %v716 = vpack.c.b16 %v678, %v676
      %v717 = vpack.c.b16 %v679, %v677
      %v718 = vpack.c.b16 %v682, %v680
      %v719 = vpack.c.b16 %v683, %v681
      %v720 = vpack.c.b16 %v686, %v684
      %v721 = vpack.c.b16 %v687, %v685
      %v722 = vpack.c.b16 %v690, %v688
      %v723 = vpack.c.b16 %v691, %v689
      %v724 = vpack.c.b16 %v694, %v692
      %v725 = vpack.c.b16 %v695, %v693
      %v726 = vpack.c.b16 %v698, %v696
      %v727 = vpack.c.b16 %v699, %v697
      %v728 = vpack.c.b16 %v702, %v700
      %v729 = vpack.c.b16 %v703, %v701
      %v730 = vpack.c.b16 %v704, %v704
      %v731 = vpack.c.b16 %v705, %v705
      %vm756 = vcmask 556032
      %v758 = vsel %vm756, %v629, 0
      %vm760 = vcmask 1041408
      %v762 = vsel %vm760, %v730, 0
      %v765 = vsel %vm760, %v731, 0
      %767 = vmatprep.subr.bf16.mxu0 %v721
      %768 = vmatpush1.bf16.msra.mxu0 %v720
      %769 = vmatprep.subr.bf16.mxu0 %v719
      %770 = vmatpush1.bf16.msra.mxu0 %v718
      %771 = vmatprep.subr.bf16.mxu0 %v717
      %772 = vmatpush1.bf16.msra.mxu0 %v716
      %773 = vmatprep.subr.bf16.mxu0 %v715
      %774 = vmatpush1.bf16.msra.mxu0 %v714
      %775 = vmatprep.subr.bf16.mxu0 %v713
      %776 = vmatpush1.bf16.msra.mxu0 %v712
      %777 = vmatprep.subr.bf16.mxu0 %v711
      %778 = vmatpush1.bf16.msra.mxu0 %v710
      %779 = vmatprep.subr.bf16.mxu0 %v709
      %780 = vmatpush1.bf16.msra.mxu0 %v708
      %781 = vmatprep.subr.bf16.mxu0 %v707
      %782 = vmatpush1.bf16.msra.mxu0 %v706
      %783 = vmatprep.subr.bf16.mxu0 0
      %784 = vmatpush2.bf16.msra.mxu0 0
      %785 = vmatprep.subr.bf16.mxu0 0
      %786 = vmatpush2.bf16.msra.mxu0 0
      %787 = vmatprep.subr.bf16.mxu0 0
      %788 = vmatpush2.bf16.msra.mxu0 0
      %789 = vmatprep.subr.bf16.mxu0 %v765
      %790 = vmatpush2.bf16.msra.mxu0 %v762
      %791 = vmatprep.subr.bf16.mxu0 %v729
      %792 = vmatpush2.bf16.msra.mxu0 %v728
      %793 = vmatprep.subr.bf16.mxu0 %v727
      %794 = vmatpush2.bf16.msra.mxu0 %v726
      %795 = vmatprep.subr.bf16.mxu0 %v725
      %796 = vmatpush2.bf16.msra.mxu0 %v724
      %797 = vmatprep.subr.bf16.mxu0 %v723
      %798 = vmatpush2.bf16.msra.mxu0 %v722
      %799 = vmatprep.mubr.bf16.mxu0 %v758
      %800 = vmatmul.mubr.bf16.gmra.mxu0 %v628
      %v801 = vpop.f32.mrf.mxu0
      %v802 = vadd.f32 %v623, %v801
      %v803 = vpop.f32.mrf.mxu0
      %v804 = vadd.f32 %v623, %v803
      %v805 = vpop.f32.mrf.mxu0
      %v806 = vpop.f32.mrf.mxu0
      %807 = vdwg.mxu0
      %v808 = vld [vmem:[%s17] sm:$0xff]
      %v809 = vld [vmem:[%s17 + $0x8] sm:$0xff]
      %v810 = vadd.f32 %v802, %v808
      %v811 = vadd.f32 %v804, %v809
      %v812 = vmax.f32 %v810, 0.0
      %v813 = vmax.f32 %v811, 0.0
      %v814 = vsel %vm591, 1, 0
      %v815 = vsel %vm592, 1, 0
      %vm816 = vcmp.eq.s32.totalorder %v814, 1
      %vm817 = vcmp.eq.s32.totalorder %v815, 1
      %v818 = vsel %vm816, %v812, 0.0
      %v819 = vsel %vm817, %v813, 0.0
      %v820 = vld [vmem:[%s18] sm:$0xf]
      %v821 = vld [vmem:[%s5] sm:$0x3]
      %823 = vset.pattern.permute.xlu0 0
      %824 = vperm.xlu0 %823, %v821
      %v825 = vpop.permute.xlu0 %824
      %v827 = vlaneseq
      %v828 = vshrl.u32 %v827, 7
      %v829 = vsub.s32 0, %v828
      %v830 = vrot.slane %v818, %v829
      %v831 = vlaneseq
      %v832 = vshrl.u32 %v831, 7
      %v833 = vsub.s32 0, %v832
      %v834 = vrot.slane %v819, %v833
      %v835 = vmul.f32 %v825, %v830
      %v836 = vmul.f32 %v825, %v834
      %v837 = vadd.f32 %v835, 0.0
      %v838 = vadd.f32 %v836, 0.0
      %s839 = scalar_lea.vmem %s5, 2
      %v840 = vld [vmem:[%s839] sm:$0x3]
      %842 = vset.pattern.permute.xlu0 0
      %843 = vperm.xlu0 %842, %v840
      %v844 = vpop.permute.xlu0 %843
      %v846 = vlaneseq
      %v847 = vshrl.u32 %v846, 7
      %v848 = vsub.s32 1, %v847
      %v849 = vrot.slane %v818, %v848
      %v850 = vlaneseq
      %v851 = vshrl.u32 %v850, 7
      %v852 = vsub.s32 1, %v851
      %v853 = vrot.slane %v819, %v852
      %v854 = vmul.f32 %v844, %v849
      %v855 = vmul.f32 %v844, %v853
      %v856 = vadd.f32 %v837, %v854
      %v857 = vadd.f32 %v838, %v855
      %s858 = scalar_lea.vmem %s5, 4
      %v859 = vld [vmem:[%s858] sm:$0x3]
      %861 = vset.pattern.permute.xlu0 0
      %862 = vperm.xlu0 %861, %v859
      %v863 = vpop.permute.xlu0 %862
      %v865 = vlaneseq
      %v866 = vshrl.u32 %v865, 7
      %v867 = vsub.s32 2, %v866
      %v868 = vrot.slane %v818, %v867
      %v869 = vlaneseq
      %v870 = vshrl.u32 %v869, 7
      %v871 = vsub.s32 2, %v870
      %v872 = vrot.slane %v819, %v871
      %v873 = vmul.f32 %v863, %v868
      %v874 = vmul.f32 %v863, %v872
      %v875 = vadd.f32 %v856, %v873
      %v876 = vadd.f32 %v857, %v874
      %s877 = scalar_lea.vmem %s5, 6
      %v878 = vld [vmem:[%s877] sm:$0x3]
      %880 = vset.pattern.permute.xlu0 0
      %881 = vperm.xlu0 %880, %v878
      %v882 = vpop.permute.xlu0 %881
      %v884 = vlaneseq
      %v885 = vshrl.u32 %v884, 7
      %v886 = vsub.s32 3, %v885
      %v887 = vrot.slane %v818, %v886
      %v888 = vlaneseq
      %v889 = vshrl.u32 %v888, 7
      %v890 = vsub.s32 3, %v889
      %v891 = vrot.slane %v819, %v890
      %v892 = vmul.f32 %v882, %v887
      %v893 = vmul.f32 %v882, %v891
      %v894 = vadd.f32 %v875, %v892
      %v895 = vadd.f32 %v876, %v893
      %s896 = scalar_lea.vmem %s5, 8
      %v897 = vld [vmem:[%s896] sm:$0x3]
      %899 = vset.pattern.permute.xlu0 0
      %900 = vperm.xlu0 %899, %v897
      %v901 = vpop.permute.xlu0 %900
      %v903 = vlaneseq
      %v904 = vshrl.u32 %v903, 7
      %v905 = vsub.s32 4, %v904
      %v906 = vrot.slane %v818, %v905
      %v907 = vlaneseq
      %v908 = vshrl.u32 %v907, 7
      %v909 = vsub.s32 4, %v908
      %v910 = vrot.slane %v819, %v909
      %v911 = vmul.f32 %v901, %v906
      %v912 = vmul.f32 %v901, %v910
      %v913 = vadd.f32 %v894, %v911
      %v914 = vadd.f32 %v895, %v912
      %s915 = scalar_lea.vmem %s5, 10
      %v916 = vld [vmem:[%s915] sm:$0x3]
      %918 = vset.pattern.permute.xlu0 0
      %919 = vperm.xlu0 %918, %v916
      %v920 = vpop.permute.xlu0 %919
      %v922 = vlaneseq
      %v923 = vshrl.u32 %v922, 7
      %v924 = vsub.s32 5, %v923
      %v925 = vrot.slane %v818, %v924
      %v926 = vlaneseq
      %v927 = vshrl.u32 %v926, 7
      %v928 = vsub.s32 5, %v927
      %v929 = vrot.slane %v819, %v928
      %v930 = vmul.f32 %v920, %v925
      %v931 = vmul.f32 %v920, %v929
      %v932 = vadd.f32 %v913, %v930
      %v933 = vadd.f32 %v914, %v931
      %s934 = scalar_lea.vmem %s5, 12
      %v935 = vld [vmem:[%s934] sm:$0x3]
      %937 = vset.pattern.permute.xlu0 0
      %938 = vperm.xlu0 %937, %v935
      %v939 = vpop.permute.xlu0 %938
      %v941 = vlaneseq
      %v942 = vshrl.u32 %v941, 7
      %v943 = vsub.s32 6, %v942
      %v944 = vrot.slane %v818, %v943
      %v945 = vlaneseq
      %v946 = vshrl.u32 %v945, 7
      %v947 = vsub.s32 6, %v946
      %v948 = vrot.slane %v819, %v947
      %v949 = vmul.f32 %v939, %v944
      %v950 = vmul.f32 %v939, %v948
      %v951 = vadd.f32 %v932, %v949
      %v952 = vadd.f32 %v933, %v950
      %s953 = scalar_lea.vmem %s5, 14
      %v954 = vld [vmem:[%s953] sm:$0x3]
      %956 = vset.pattern.permute.xlu0 0
      %957 = vperm.xlu0 %956, %v954
      %v958 = vpop.permute.xlu0 %957
      %v960 = vlaneseq
      %v961 = vshrl.u32 %v960, 7
      %v962 = vsub.s32 7, %v961
      %v963 = vrot.slane %v818, %v962
      %v964 = vlaneseq
      %v965 = vshrl.u32 %v964, 7
      %v966 = vsub.s32 7, %v965
      %v967 = vrot.slane %v819, %v966
      %v968 = vmul.f32 %v958, %v963
      %v969 = vmul.f32 %v958, %v967
      %v970 = vadd.f32 %v951, %v968
      %v971 = vadd.f32 %v952, %v969
      %v972 = vld [vmem:[%s6] sm:$0x3]
      %974 = vset.pattern.permute.xlu0 0
      %975 = vperm.xlu0 %974, %v972
      %v976 = vpop.permute.xlu0 %975
      %v979 = vlaneseq
      %v980 = vshrl.u32 %v979, 7
      %v981 = vsub.s32 0, %v980
      %v982 = vrot.slane %v820, %v981
      %v983 = vlaneseq
      %v984 = vshrl.u32 %v983, 7
      %v985 = vsub.s32 2, %v984
      %v986 = vrot.slane %v820, %v985
      %v989 = vlaneseq
      %v990 = vshrl.u32 %v989, 7
      %v991 = vsub.s32 0, %v990
      %v992 = vrot.slane %v982, %v991
      %v993 = vlaneseq
      %v994 = vshrl.u32 %v993, 7
      %v995 = vsub.s32 0, %v994
      %v996 = vrot.slane %v986, %v995
      %v997 = vmul.f32 %v976, %v992
      %v998 = vmul.f32 %v976, %v996
      %v999 = vadd.f32 %v970, %v997
      %v1000 = vadd.f32 %v971, %v998
      %s1001 = scalar_lea.vmem %s6, 2
      %v1002 = vld [vmem:[%s1001] sm:$0x3]
      %1004 = vset.pattern.permute.xlu0 0
      %1005 = vperm.xlu0 %1004, %v1002
      %v1006 = vpop.permute.xlu0 %1005
      %v1008 = vlaneseq
      %v1009 = vshrl.u32 %v1008, 7
      %v1010 = vsub.s32 1, %v1009
      %v1011 = vrot.slane %v820, %v1010
      %v1012 = vlaneseq
      %v1013 = vshrl.u32 %v1012, 7
      %v1014 = vsub.s32 3, %v1013
      %v1015 = vrot.slane %v820, %v1014
      %v1018 = vlaneseq
      %v1019 = vshrl.u32 %v1018, 7
      %v1020 = vsub.s32 1, %v1019
      %v1021 = vrot.slane %v1011, %v1020
      %v1022 = vlaneseq
      %v1023 = vshrl.u32 %v1022, 7
      %v1024 = vsub.s32 1, %v1023
      %v1025 = vrot.slane %v1015, %v1024
      %v1026 = vmul.f32 %v1006, %v1021
      %v1027 = vmul.f32 %v1006, %v1025
      %v1028 = vadd.f32 %v999, %v1026
      %v1029 = vadd.f32 %v1000, %v1027
      %v1030 = vld [vmem:[%s7] sm:$0x3]
      %1032 = vset.pattern.permute.xlu0 0
      %1033 = vperm.xlu0 %1032, %v1030
      %v1034 = vpop.permute.xlu0 %1033
      %v1036 = vadd.f32 %v1028, %v1034
      %v1037 = vadd.f32 %v1029, %v1034
      %v1038 = vtanh.pop %v1036
      %v1039 = vtanh.pop %v1037
      %v1040 = vld [vmem:[%s8] sm:$0xff]
      %1042 = vset.pattern.permute.xlu0 0
      %1043 = vperm.xlu0 %1042, %v1040
      %v1044 = vpop.permute.xlu0 %1043
      %v1046 = vlaneseq
      %v1047 = vshrl.u32 %v1046, 7
      %v1048 = vsub.s32 0, %v1047
      %v1049 = vrot.slane %v1038, %v1048
      %v1050 = vlaneseq
      %v1051 = vshrl.u32 %v1050, 7
      %v1052 = vsub.s32 0, %v1051
      %v1053 = vrot.slane %v1039, %v1052
      %v1054 = vmul.f32 %v1044, %v1049
      %v1055 = vmul.f32 %v1044, %v1053
      %v1056 = vadd.f32 %v1054, 0.0
      %v1057 = vadd.f32 %v1055, 0.0
      %s1058 = scalar_lea.vmem %s8, 8
      %v1059 = vld [vmem:[%s1058] sm:$0xff]
      %1061 = vset.pattern.permute.xlu0 0
      %1062 = vperm.xlu0 %1061, %v1059
      %v1063 = vpop.permute.xlu0 %1062
      %v1065 = vlaneseq
      %v1066 = vshrl.u32 %v1065, 7
      %v1067 = vsub.s32 1, %v1066
      %v1068 = vrot.slane %v1038, %v1067
      %v1069 = vlaneseq
      %v1070 = vshrl.u32 %v1069, 7
      %v1071 = vsub.s32 1, %v1070
      %v1072 = vrot.slane %v1039, %v1071
      %v1073 = vmul.f32 %v1063, %v1068
      %v1074 = vmul.f32 %v1063, %v1072
      %v1075 = vadd.f32 %v1056, %v1073
      %v1076 = vadd.f32 %v1057, %v1074
      %v1077 = vld [vmem:[%s9] sm:$0xff]
      %1079 = vset.pattern.permute.xlu0 0
      %1080 = vperm.xlu0 %1079, %v1077
      %v1081 = vpop.permute.xlu0 %1080
      %v1083 = vadd.f32 %v1075, %v1081
      %v1084 = vadd.f32 %v1076, %v1081
      %v1087 = vcombine.low %v1038, %v1039
      %v1089 = vunpack.c.l.s4 1983009808
      %v1090 = vunpack.c.0.s8 %v1089
      %v1091 = vlaneseq
      %v1092 = vshrl.u32 %v1091, 7
      %v1093 = vsub.s32 %v1090, %v1092
      %v1094 = vrot.slane %v1087, %v1093
      %1096 = vst [vmem:[%s18] sm:$0xf] %v1094
      %1097 = vst [vmem:[%s17] sm:$0xff] %v1083
      %1098 = vst [vmem:[%s17 + $0x8] sm:$0xff] %v1084
      %1101 = vrot.lane.b32.xlu0 %v818, 127
      %v1102 = vpop.permute.xlu0 %1101
      %1103 = vrot.lane.b32.xlu0 %v819, 127
      %v1104 = vpop.permute.xlu0 %1103
      %vm1105 = vcmask 1039360
      %v1106 = vsel %vm1105, %v1102, %v1104
      %v1110 = vsel %vm1105, %v1104, %v1102
      %1111 = vrot.lane.b32.xlu0 %v818, 126
      %v1112 = vpop.permute.xlu0 %1111
      %1113 = vrot.lane.b32.xlu0 %v819, 126
      %v1114 = vpop.permute.xlu0 %1113
      %vm1115 = vcmask 1031168
      %v1116 = vsel %vm1115, %v1112, %v1114
      %v1120 = vsel %vm1115, %v1114, %v1112
      %1121 = vrot.lane.b32.xlu0 %v818, 125
      %v1122 = vpop.permute.xlu0 %1121
      %1123 = vrot.lane.b32.xlu0 %v819, 125
      %v1124 = vpop.permute.xlu0 %1123
      %vm1125 = vcmask 1022976
      %v1126 = vsel %vm1125, %v1122, %v1124
      %v1130 = vsel %vm1125, %v1124, %v1122
      %1131 = vrot.lane.b32.xlu0 %v818, 124
      %v1132 = vpop.permute.xlu0 %1131
      %1133 = vrot.lane.b32.xlu0 %v819, 124
      %v1134 = vpop.permute.xlu0 %1133
      %vm1135 = vcmask 1014784
      %v1136 = vsel %vm1135, %v1132, %v1134
      %v1140 = vsel %vm1135, %v1134, %v1132
      %1141 = vrot.lane.b32.xlu0 %v818, 118
      %v1142 = vpop.permute.xlu0 %1141
      %1143 = vrot.lane.b32.xlu0 %v819, 118
      %v1144 = vpop.permute.xlu0 %1143
      %vm1145 = vcmask 965632
      %v1146 = vsel %vm1145, %v1142, %v1144
      %v1150 = vsel %vm1145, %v1144, %v1142
      %1151 = vrot.lane.b32.xlu0 %v818, 117
      %v1152 = vpop.permute.xlu0 %1151
      %1153 = vrot.lane.b32.xlu0 %v819, 117
      %v1154 = vpop.permute.xlu0 %1153
      %vm1155 = vcmask 957440
      %v1156 = vsel %vm1155, %v1152, %v1154
      %v1160 = vsel %vm1155, %v1154, %v1152
      %1161 = vrot.lane.b32.xlu0 %v818, 116
      %v1162 = vpop.permute.xlu0 %1161
      %1163 = vrot.lane.b32.xlu0 %v819, 116
      %v1164 = vpop.permute.xlu0 %1163
      %vm1165 = vcmask 949248
      %v1166 = vsel %vm1165, %v1162, %v1164
      %v1170 = vsel %vm1165, %v1164, %v1162
      %1171 = vrot.lane.b32.xlu0 %v818, 115
      %v1172 = vpop.permute.xlu0 %1171
      %1173 = vrot.lane.b32.xlu0 %v819, 115
      %v1174 = vpop.permute.xlu0 %1173
      %vm1175 = vcmask 941056
      %v1176 = vsel %vm1175, %v1172, %v1174
      %v1180 = vsel %vm1175, %v1174, %v1172
      %1181 = vrot.lane.b32.xlu0 %v818, 114
      %v1182 = vpop.permute.xlu0 %1181
      %1183 = vrot.lane.b32.xlu0 %v819, 114
      %v1184 = vpop.permute.xlu0 %1183
      %vm1185 = vcmask 932864
      %v1186 = vsel %vm1185, %v1182, %v1184
      %v1190 = vsel %vm1185, %v1184, %v1182
      %1191 = vrot.lane.b32.xlu0 %v818, 108
      %v1192 = vpop.permute.xlu0 %1191
      %1193 = vrot.lane.b32.xlu0 %v819, 108
      %v1194 = vpop.permute.xlu0 %1193
      %vm1195 = vcmask 883712
      %v1196 = vsel %vm1195, %v1192, %v1194
      %v1200 = vsel %vm1195, %v1194, %v1192
      %1201 = vrot.lane.b32.xlu0 %v818, 107
      %v1202 = vpop.permute.xlu0 %1201
      %1203 = vrot.lane.b32.xlu0 %v819, 107
      %v1204 = vpop.permute.xlu0 %1203
      %vm1205 = vcmask 875520
      %v1206 = vsel %vm1205, %v1202, %v1204
      %v1210 = vsel %vm1205, %v1204, %v1202
      %1211 = vrot.lane.b32.xlu0 %v818, 106
      %v1212 = vpop.permute.xlu0 %1211
      %1213 = vrot.lane.b32.xlu0 %v819, 106
      %v1214 = vpop.permute.xlu0 %1213
      %vm1215 = vcmask 867328
      %v1216 = vsel %vm1215, %v1212, %v1214
      %v1220 = vsel %vm1215, %v1214, %v1212
      %1221 = vrot.lane.b32.xlu0 %v818, 105
      %v1222 = vpop.permute.xlu0 %1221
      %1223 = vrot.lane.b32.xlu0 %v819, 105
      %v1224 = vpop.permute.xlu0 %1223
      %vm1225 = vcmask 859136
      %v1226 = vsel %vm1225, %v1222, %v1224
      %v1230 = vsel %vm1225, %v1224, %v1222
      %1231 = vrot.lane.b32.xlu0 %v818, 104
      %v1232 = vpop.permute.xlu0 %1231
      %1233 = vrot.lane.b32.xlu0 %v819, 104
      %v1234 = vpop.permute.xlu0 %1233
      %vm1235 = vcmask 850944
      %v1236 = vsel %vm1235, %v1232, %v1234
      %v1240 = vsel %vm1235, %v1234, %v1232
      %1241 = vrot.lane.b32.xlu0 %v818, 98
      %v1242 = vpop.permute.xlu0 %1241
      %1243 = vrot.lane.b32.xlu0 %v819, 98
      %v1244 = vpop.permute.xlu0 %1243
      %vm1245 = vcmask 801792
      %v1246 = vsel %vm1245, %v1242, %v1244
      %v1250 = vsel %vm1245, %v1244, %v1242
      %1251 = vrot.lane.b32.xlu0 %v818, 97
      %v1252 = vpop.permute.xlu0 %1251
      %1253 = vrot.lane.b32.xlu0 %v819, 97
      %v1254 = vpop.permute.xlu0 %1253
      %vm1255 = vcmask 793600
      %v1256 = vsel %vm1255, %v1252, %v1254
      %v1260 = vsel %vm1255, %v1254, %v1252
      %1261 = vrot.lane.b32.xlu0 %v818, 96
      %v1262 = vpop.permute.xlu0 %1261
      %1263 = vrot.lane.b32.xlu0 %v819, 96
      %v1264 = vpop.permute.xlu0 %1263
      %vm1265 = vcmask 785408
      %v1266 = vsel %vm1265, %v1262, %v1264
      %v1270 = vsel %vm1265, %v1264, %v1262
      %1271 = vrot.lane.b32.xlu0 %v818, 95
      %v1272 = vpop.permute.xlu0 %1271
      %1273 = vrot.lane.b32.xlu0 %v819, 95
      %v1274 = vpop.permute.xlu0 %1273
      %vm1275 = vcmask 777216
      %v1276 = vsel %vm1275, %v1272, %v1274
      %v1280 = vsel %vm1275, %v1274, %v1272
      %1281 = vrot.lane.b32.xlu0 %v818, 94
      %v1282 = vpop.permute.xlu0 %1281
      %1283 = vrot.lane.b32.xlu0 %v819, 94
      %v1284 = vpop.permute.xlu0 %1283
      %vm1285 = vcmask 769024
      %v1286 = vsel %vm1285, %v1282, %v1284
      %v1290 = vsel %vm1285, %v1284, %v1282
      %1291 = vrot.lane.b32.xlu0 %v818, 88
      %v1292 = vpop.permute.xlu0 %1291
      %1293 = vrot.lane.b32.xlu0 %v819, 88
      %v1294 = vpop.permute.xlu0 %1293
      %vm1295 = vcmask 719872
      %v1296 = vsel %vm1295, %v1292, %v1294
      %v1300 = vsel %vm1295, %v1294, %v1292
      %1301 = vrot.lane.b32.xlu0 %v818, 87
      %v1302 = vpop.permute.xlu0 %1301
      %1303 = vrot.lane.b32.xlu0 %v819, 87
      %v1304 = vpop.permute.xlu0 %1303
      %vm1305 = vcmask 711680
      %v1306 = vsel %vm1305, %v1302, %v1304
      %v1310 = vsel %vm1305, %v1304, %v1302
      %1311 = vrot.lane.b32.xlu0 %v818, 86
      %v1312 = vpop.permute.xlu0 %1311
      %1313 = vrot.lane.b32.xlu0 %v819, 86
      %v1314 = vpop.permute.xlu0 %1313
      %vm1315 = vcmask 703488
      %v1316 = vsel %vm1315, %v1312, %v1314
      %v1320 = vsel %vm1315, %v1314, %v1312
      %1321 = vrot.lane.b32.xlu0 %v818, 85
      %v1322 = vpop.permute.xlu0 %1321
      %1323 = vrot.lane.b32.xlu0 %v819, 85
      %v1324 = vpop.permute.xlu0 %1323
      %vm1325 = vcmask 695296
      %v1326 = vsel %vm1325, %v1322, %v1324
      %v1330 = vsel %vm1325, %v1324, %v1322
      %1331 = vrot.lane.b32.xlu0 %v818, 84
      %v1332 = vpop.permute.xlu0 %1331
      %1333 = vrot.lane.b32.xlu0 %v819, 84
      %v1334 = vpop.permute.xlu0 %1333
      %vm1335 = vcmask 687104
      %v1336 = vsel %vm1335, %v1332, %v1334
      %v1340 = vsel %vm1335, %v1334, %v1332
      %v1341 = vpack.c.bf16 %v1106, %v818
      %v1342 = vpack.c.bf16 %v1110, %v819
      %v1343 = vpack.c.bf16 %v1126, %v1116
      %v1344 = vpack.c.bf16 %v1130, %v1120
      %v1345 = vpack.c.bf16 %v1146, %v1136
      %v1346 = vpack.c.bf16 %v1150, %v1140
      %v1347 = vpack.c.bf16 %v1166, %v1156
      %v1348 = vpack.c.bf16 %v1170, %v1160
      %v1349 = vpack.c.bf16 %v1186, %v1176
      %v1350 = vpack.c.bf16 %v1190, %v1180
      %v1351 = vpack.c.bf16 %v1206, %v1196
      %v1352 = vpack.c.bf16 %v1210, %v1200
      %v1353 = vpack.c.bf16 %v1226, %v1216
      %v1354 = vpack.c.bf16 %v1230, %v1220
      %v1355 = vpack.c.bf16 %v1246, %v1236
      %v1356 = vpack.c.bf16 %v1250, %v1240
      %v1357 = vpack.c.bf16 %v1266, %v1256
      %v1358 = vpack.c.bf16 %v1270, %v1260
      %v1359 = vpack.c.bf16 %v1286, %v1276
      %v1360 = vpack.c.bf16 %v1290, %v1280
      %v1361 = vpack.c.bf16 %v1306, %v1296
      %v1362 = vpack.c.bf16 %v1310, %v1300
      %v1363 = vpack.c.bf16 %v1326, %v1316
      %v1364 = vpack.c.bf16 %v1330, %v1320
      %v1365 = vpack.c.bf16 %v1336, %v1336
      %v1366 = vpack.c.bf16 %v1340, %v1340
      %v1367 = vld [vmem:[%s10] sm:$0xff]
      %v1368 = vld [vmem:[%s11] sm:$0xff]
      %1370 = vset.pattern.permute.xlu0 0
      %1371 = vperm.xlu0 %1370, %v1368
      %v1372 = vpop.permute.xlu0 %1371
      %v1375 = vunpack.c.l.b16 %v1367
      %v1376 = vunpack.c.h.b16 %v1367
      %v1377 = vpack.c.b16 %v1375, %v1375
      %v1378 = vpack.c.b16 %v1376, %v1376
      %vm1380 = vcmask 588800
      %v1382 = vsel %vm1380, %v1378, 0
      %vm1384 = vcmask 1043456
      %v1386 = vsel %vm1384, %v1365, 0
      %v1389 = vsel %vm1384, %v1366, 0
      %1391 = vmatprep.subr.bf16.mxu0 %v1356
      %1392 = vmatpush1.bf16.msra.mxu0 %v1355
      %1393 = vmatprep.subr.bf16.mxu0 %v1354
      %1394 = vmatpush1.bf16.msra.mxu0 %v1353
      %1395 = vmatprep.subr.bf16.mxu0 %v1352
      %1396 = vmatpush1.bf16.msra.mxu0 %v1351
      %1397 = vmatprep.subr.bf16.mxu0 %v1350
      %1398 = vmatpush1.bf16.msra.mxu0 %v1349
      %1399 = vmatprep.subr.bf16.mxu0 %v1348
      %1400 = vmatpush1.bf16.msra.mxu0 %v1347
      %1401 = vmatprep.subr.bf16.mxu0 %v1346
      %1402 = vmatpush1.bf16.msra.mxu0 %v1345
      %1403 = vmatprep.subr.bf16.mxu0 %v1344
      %1404 = vmatpush1.bf16.msra.mxu0 %v1343
      %1405 = vmatprep.subr.bf16.mxu0 %v1342
      %1406 = vmatpush1.bf16.msra.mxu0 %v1341
      %1407 = vmatprep.subr.bf16.mxu0 0
      %1408 = vmatpush2.bf16.msra.mxu0 0
      %1409 = vmatprep.subr.bf16.mxu0 0
      %1410 = vmatpush2.bf16.msra.mxu0 0
      %1411 = vmatprep.subr.bf16.mxu0 0
      %1412 = vmatpush2.bf16.msra.mxu0 0
      %1413 = vmatprep.subr.bf16.mxu0 %v1389
      %1414 = vmatpush2.bf16.msra.mxu0 %v1386
      %1415 = vmatprep.subr.bf16.mxu0 %v1364
      %1416 = vmatpush2.bf16.msra.mxu0 %v1363
      %1417 = vmatprep.subr.bf16.mxu0 %v1362
      %1418 = vmatpush2.bf16.msra.mxu0 %v1361
      %1419 = vmatprep.subr.bf16.mxu0 %v1360
      %1420 = vmatpush2.bf16.msra.mxu0 %v1359
      %1421 = vmatprep.subr.bf16.mxu0 %v1358
      %1422 = vmatpush2.bf16.msra.mxu0 %v1357
      %1423 = vmatprep.mubr.bf16.mxu0 %v1382
      %1424 = vmatmul.mubr.bf16.gmra.mxu0 %v1377
      %v1425 = vpop.f32.mrf.mxu0
      %v1426 = vadd.f32 %v1372, %v1425
      %v1427 = vpop.f32.mrf.mxu0
      %v1428 = vadd.f32 %v1372, %v1427
      %v1429 = vpop.f32.mrf.mxu0
      %v1430 = vpop.f32.mrf.mxu0
      %1431 = vdwg.mxu0
      %v1432 = vmax.f32 %v1426, 0.0
      %v1433 = vmax.f32 %v1428, 0.0
      %v1434 = vsub.f32 0.0, %v1432
      %v1435 = vsub.f32 0.0, %v1433
      %v1436 = vld [vmem:[%s12] sm:$0xff]
      %v1437 = vld [vmem:[%s12 + $0x8] sm:$0xff]
      %v1438 = vmul.f32 %v1436, %v830
      %v1439 = vmul.f32 %v1437, %v834
      %v1440 = vadd.f32 %v1438, 0.0
      %v1441 = vadd.f32 %v1439, 0.0
      %s1442 = scalar_lea.vmem %s12, 16
      %v1443 = vld [vmem:[%s1442] sm:$0xff]
      %v1444 = vld [vmem:[%s1442 + $0x8] sm:$0xff]
      %v1445 = vmul.f32 %v1443, %v849
      %v1446 = vmul.f32 %v1444, %v853
      %v1447 = vadd.f32 %v1440, %v1445
      %v1448 = vadd.f32 %v1441, %v1446
      %s1449 = scalar_lea.vmem %s12, 32
      %v1450 = vld [vmem:[%s1449] sm:$0xff]
      %v1451 = vld [vmem:[%s1449 + $0x8] sm:$0xff]
      %v1452 = vmul.f32 %v1450, %v868
      %v1453 = vmul.f32 %v1451, %v872
      %v1454 = vadd.f32 %v1447, %v1452
      %v1455 = vadd.f32 %v1448, %v1453
      %s1456 = scalar_lea.vmem %s12, 48
      %v1457 = vld [vmem:[%s1456] sm:$0xff]
      %v1458 = vld [vmem:[%s1456 + $0x8] sm:$0xff]
      %v1459 = vmul.f32 %v1457, %v887
      %v1460 = vmul.f32 %v1458, %v891
      %v1461 = vadd.f32 %v1454, %v1459
      %v1462 = vadd.f32 %v1455, %v1460
      %s1463 = scalar_lea.vmem %s12, 64
      %v1464 = vld [vmem:[%s1463] sm:$0xff]
      %v1465 = vld [vmem:[%s1463 + $0x8] sm:$0xff]
      %v1466 = vmul.f32 %v1464, %v906
      %v1467 = vmul.f32 %v1465, %v910
      %v1468 = vadd.f32 %v1461, %v1466
      %v1469 = vadd.f32 %v1462, %v1467
      %s1470 = scalar_lea.vmem %s12, 80
      %v1471 = vld [vmem:[%s1470] sm:$0xff]
      %v1472 = vld [vmem:[%s1470 + $0x8] sm:$0xff]
      %v1473 = vmul.f32 %v1471, %v925
      %v1474 = vmul.f32 %v1472, %v929
      %v1475 = vadd.f32 %v1468, %v1473
      %v1476 = vadd.f32 %v1469, %v1474
      %s1477 = scalar_lea.vmem %s12, 96
      %v1478 = vld [vmem:[%s1477] sm:$0xff]
      %v1479 = vld [vmem:[%s1477 + $0x8] sm:$0xff]
      %v1480 = vmul.f32 %v1478, %v944
      %v1481 = vmul.f32 %v1479, %v948
      %v1482 = vadd.f32 %v1475, %v1480
      %v1483 = vadd.f32 %v1476, %v1481
      %s1484 = scalar_lea.vmem %s12, 112
      %v1485 = vld [vmem:[%s1484] sm:$0xff]
      %v1486 = vld [vmem:[%s1484 + $0x8] sm:$0xff]
      %v1487 = vmul.f32 %v1485, %v963
      %v1488 = vmul.f32 %v1486, %v967
      %v1489 = vadd.f32 %v1482, %v1487
      %v1490 = vadd.f32 %v1483, %v1488
      %v1491 = vld [vmem:[%s13] sm:$0xff]
      %v1492 = vld [vmem:[%s13 + $0x8] sm:$0xff]
      %v1493 = vlaneseq
      %v1494 = vshrl.u32 %v1493, 7
      %v1495 = vsub.s32 0, %v1494
      %v1496 = vrot.slane %v1434, %v1495
      %v1497 = vlaneseq
      %v1498 = vshrl.u32 %v1497, 7
      %v1499 = vsub.s32 0, %v1498
      %v1500 = vrot.slane %v1435, %v1499
      %v1501 = vmul.f32 %v1491, %v1496
      %v1502 = vmul.f32 %v1492, %v1500
      %v1503 = vadd.f32 %v1489, %v1501
      %v1504 = vadd.f32 %v1490, %v1502
      %s1505 = scalar_lea.vmem %s13, 16
      %v1506 = vld [vmem:[%s1505] sm:$0xff]
      %v1507 = vld [vmem:[%s1505 + $0x8] sm:$0xff]
      %v1508 = vlaneseq
      %v1509 = vshrl.u32 %v1508, 7
      %v1510 = vsub.s32 1, %v1509
      %v1511 = vrot.slane %v1434, %v1510
      %v1512 = vlaneseq
      %v1513 = vshrl.u32 %v1512, 7
      %v1514 = vsub.s32 1, %v1513
      %v1515 = vrot.slane %v1435, %v1514
      %v1516 = vmul.f32 %v1506, %v1511
      %v1517 = vmul.f32 %v1507, %v1515
      %v1518 = vadd.f32 %v1503, %v1516
      %v1519 = vadd.f32 %v1504, %v1517
      %s1520 = scalar_lea.vmem %s13, 32
      %v1521 = vld [vmem:[%s1520] sm:$0xff]
      %v1522 = vld [vmem:[%s1520 + $0x8] sm:$0xff]
      %v1523 = vlaneseq
      %v1524 = vshrl.u32 %v1523, 7
      %v1525 = vsub.s32 2, %v1524
      %v1526 = vrot.slane %v1434, %v1525
      %v1527 = vlaneseq
      %v1528 = vshrl.u32 %v1527, 7
      %v1529 = vsub.s32 2, %v1528
      %v1530 = vrot.slane %v1435, %v1529
      %v1531 = vmul.f32 %v1521, %v1526
      %v1532 = vmul.f32 %v1522, %v1530
      %v1533 = vadd.f32 %v1518, %v1531
      %v1534 = vadd.f32 %v1519, %v1532
      %s1535 = scalar_lea.vmem %s13, 48
      %v1536 = vld [vmem:[%s1535] sm:$0xff]
      %v1537 = vld [vmem:[%s1535 + $0x8] sm:$0xff]
      %v1538 = vlaneseq
      %v1539 = vshrl.u32 %v1538, 7
      %v1540 = vsub.s32 3, %v1539
      %v1541 = vrot.slane %v1434, %v1540
      %v1542 = vlaneseq
      %v1543 = vshrl.u32 %v1542, 7
      %v1544 = vsub.s32 3, %v1543
      %v1545 = vrot.slane %v1435, %v1544
      %v1546 = vmul.f32 %v1536, %v1541
      %v1547 = vmul.f32 %v1537, %v1545
      %v1548 = vadd.f32 %v1533, %v1546
      %v1549 = vadd.f32 %v1534, %v1547
      %s1550 = scalar_lea.vmem %s13, 64
      %v1551 = vld [vmem:[%s1550] sm:$0xff]
      %v1552 = vld [vmem:[%s1550 + $0x8] sm:$0xff]
      %v1553 = vlaneseq
      %v1554 = vshrl.u32 %v1553, 7
      %v1555 = vsub.s32 4, %v1554
      %v1556 = vrot.slane %v1434, %v1555
      %v1557 = vlaneseq
      %v1558 = vshrl.u32 %v1557, 7
      %v1559 = vsub.s32 4, %v1558
      %v1560 = vrot.slane %v1435, %v1559
      %v1561 = vmul.f32 %v1551, %v1556
      %v1562 = vmul.f32 %v1552, %v1560
      %v1563 = vadd.f32 %v1548, %v1561
      %v1564 = vadd.f32 %v1549, %v1562
      %s1565 = scalar_lea.vmem %s13, 80
      %v1566 = vld [vmem:[%s1565] sm:$0xff]
      %v1567 = vld [vmem:[%s1565 + $0x8] sm:$0xff]
      %v1568 = vlaneseq
      %v1569 = vshrl.u32 %v1568, 7
      %v1570 = vsub.s32 5, %v1569
      %v1571 = vrot.slane %v1434, %v1570
      %v1572 = vlaneseq
      %v1573 = vshrl.u32 %v1572, 7
      %v1574 = vsub.s32 5, %v1573
      %v1575 = vrot.slane %v1435, %v1574
      %v1576 = vmul.f32 %v1566, %v1571
      %v1577 = vmul.f32 %v1567, %v1575
      %v1578 = vadd.f32 %v1563, %v1576
      %v1579 = vadd.f32 %v1564, %v1577
      %s1580 = scalar_lea.vmem %s13, 96
      %v1581 = vld [vmem:[%s1580] sm:$0xff]
      %v1582 = vld [vmem:[%s1580 + $0x8] sm:$0xff]
      %v1583 = vlaneseq
      %v1584 = vshrl.u32 %v1583, 7
      %v1585 = vsub.s32 6, %v1584
      %v1586 = vrot.slane %v1434, %v1585
      %v1587 = vlaneseq
      %v1588 = vshrl.u32 %v1587, 7
      %v1589 = vsub.s32 6, %v1588
      %v1590 = vrot.slane %v1435, %v1589
      %v1591 = vmul.f32 %v1581, %v1586
      %v1592 = vmul.f32 %v1582, %v1590
      %v1593 = vadd.f32 %v1578, %v1591
      %v1594 = vadd.f32 %v1579, %v1592
      %s1595 = scalar_lea.vmem %s13, 112
      %v1596 = vld [vmem:[%s1595] sm:$0xff]
      %v1597 = vld [vmem:[%s1595 + $0x8] sm:$0xff]
      %v1598 = vlaneseq
      %v1599 = vshrl.u32 %v1598, 7
      %v1600 = vsub.s32 7, %v1599
      %v1601 = vrot.slane %v1434, %v1600
      %v1602 = vlaneseq
      %v1603 = vshrl.u32 %v1602, 7
      %v1604 = vsub.s32 7, %v1603
      %v1605 = vrot.slane %v1435, %v1604
      %v1606 = vmul.f32 %v1596, %v1601
      %v1607 = vmul.f32 %v1597, %v1605
      %v1608 = vadd.f32 %v1593, %v1606
      %v1609 = vadd.f32 %v1594, %v1607
      %1610 = vadd.xlane.f32.xlu0 %v1608
      %v1611 = vpop.xlane.xlu0 %1610
      %1612 = vadd.xlane.f32.xlu0 %v1609
      %v1613 = vpop.xlane.xlu0 %1612
      %vm1614 = vcmask 7168
      %v1615 = vsel %vm1614, %v1611, %v1613
      %vm1616 = vcmask 15360
      %v1617 = vsel %vm1616, %v1615, 0.0
      %v1618 = vld [vmem:[%s14] sm:$0xff]
      %1620 = vset.pattern.permute.xlu0 0
      %1621 = vperm.xlu0 %1620, %v1618
      %v1622 = vpop.permute.xlu0 %1621
      %v1624 = vmul.f32 %v1617, %v1622
      %v1625 = vld [vmem:[%s15] sm:$0xff]
      %1627 = vset.pattern.permute.xlu0 0
      %1628 = vperm.xlu0 %1627, %v1625
      %v1629 = vpop.permute.xlu0 %1628
      %v1631 = vadd.f32 %v1624, %v1629
      %vm1632 = vcmp.gt.f32.partialorder %v1631, 20.0
      %v1633 = vmin.f32 %v1631, 20.0
      %v1634 = vmul.f32 %v1633, 1.442695
      %v1635 = vpow.pop %v1634
      %v1636 = vadd.f32 %v1635, 1.0
      %v1637 = vlog2.pop %v1636
      %v1638 = vmul.f32 %v1637, 0.6931472
      %v1639 = vmul.f32 -0.5, %v1635
      %v1640 = vadd.f32 %v1639, 1.0
      %v1641 = vmul.f32 %v1640, %v1635
      %v1642 = vand.u32 2147483647, %v1635
      %vm1643 = vcmp.lt.f32.partialorder %v1642, 0.0004427343
      %v1644 = vsel %vm1643, %v1641, %v1638
      %v1645 = vsel %vm1632, %v1631, %v1644
      %1646 = vst [vmem:[%s568] sm:$0xff] %v1645
      %p1647 = scmp.lt.s32.totalorder %s30, 7
      %s1648 = scalar_select %p1647, %s30, 7
      %s1649 = smul.addr %s1648, 8
      %s1650 = scalar_lea.vmem %s16, %s1649
      // Predicated region
      $region89: #{run.1} parent=83 // pred_check
        %p1651 = pneg %p389
      $region90: #{run.1} parent=83 // pred_check_branch
        %1653 = sbr.rel (%p1651) target = $region92
      $region91: #{run.1} parent=83 // pred_region
        _
      $region92: #{run.1} parent=83 // pred_fallthru
        _
      // Predicated region
      $region93: #{run.1} parent=83 // pred_check
        %p1654 = pneg %p410
      $region94: #{run.1} parent=83 // pred_check_branch
        %1656 = sbr.rel (%p1654) target = $region96
      $region95: #{run.1} parent=83 // pred_region
        _
      $region96: #{run.1} parent=83 // pred_fallthru
        _
      // Predicated region
      $region97: #{run.1} parent=83 // pred_check
        %p1657 = pneg %p431
      $region98: #{run.1} parent=83 // pred_check_branch
        %1659 = sbr.rel (%p1657) target = $region100
      $region99: #{run.1} parent=83 // pred_region
        _
      $region100: #{run.1} parent=83 // pred_fallthru
        _
      // Predicated region
      $region101: #{run.1} parent=83 // pred_check
        %p1660 = pneg %p410
      $region102: #{run.1} parent=83 // pred_check_branch
        %1662 = sbr.rel (%p1660) target = $region104
      $region103: #{run.1} parent=83 // pred_region
        _
      $region104: #{run.1} parent=83 // pred_fallthru
        _
      // Predicated region
      $region105: #{run.1} parent=83 // pred_check
        %p1663 = pneg %p431
      $region106: #{run.1} parent=83 // pred_check_branch
        %1665 = sbr.rel (%p1663) target = $region108
      $region107: #{run.1} parent=83 // pred_region
        _
      $region108: #{run.1} parent=83 // pred_fallthru
        _
    $region84: #{run.1} parent=5 // pred_fallthru
      _
    %p1666 = scmp.le.s32.totalorder 2, %s25
    // Predicated region
    $region109: #{run.1} parent=5 // pred_check
      %p1667 = pneg %p1666
    $region110: #{run.1} parent=5 // pred_check_branch
      %1669 = sbr.rel (%p1667) target = $region112
    $region111: #{run.1} parent=5 // pred_region
      %s1670 = ssub.s32 %s25, 2
      // Predicated region
      $region113: #{run.1} parent=111 // pred_check
        %p1671 = pneg %p395
      $region114: #{run.1} parent=111 // pred_check_branch
        %1673 = sbr.rel (%p1671) target = $region116
      $region115: #{run.1} parent=111 // pred_region
        %p1674 = scmp.lt.s32.totalorder %s31, 7
        %s1675 = scalar_select %p1674, %s31, 7
        %s1676 = smul.addr %s1675, 8
        %s1677 = scalar_lea.vmem %s16, %s1676
      $region116: #{run.1} parent=111 // pred_fallthru
        _
    $region112: #{run.1} parent=5 // pred_fallthru
      _
  $region6: #{run.1} parent=0 // loop_footer
    %s29 = sadd.s32 1, %s25
  $region7: #{run.1} parent=0 // loop_footer_branch
    %24 = sbr.rel target = $region3
  $region8: #{run.1} parent=0 // loop_exit
    _

</llo_original>
